<compile_context>
chip_gen: v7x
topology: tpu7x:2x2x1
jax: 0.10.0
libtpu: 0.0.40
codegen_flags: <defaults>
</compile_context>

<pallas_src>
import functools

import jax
import jax.numpy as jnp
from jax import lax
from jax.experimental import pallas as pl
from jax.experimental.pallas import tpu as pltpu


# ----------------------------- fused kernel ---------------------------------


def _fused_convrelunorm_kernel(x_ref, m_ref, w0_ref, wr_ref, b_ref, g_ref,
                               be_ref, wp_ref, bp_ref, o_ref,
                               *, n_layers, K, hidden, eps, T):
    """Whole ConvReluNorm forward for one batch element, (C, T)-layout.

    x_ref:  (Cin, Tp)           Tp = T + 2*P, P = n_layers*(K//2), zero halo
    m_ref:  (1,  Tp)            mask, zero in the halo and beyond valid length
    w0_ref: (K*H, Cin)          layer-0 conv weight, tap-major rows (k*H + o)
    wr_ref: (n_layers-1, K*H, H) conv weights for layers 1..n-1
    b_ref/g_ref/be_ref: (n_layers, H, 1)   conv bias / LN gamma / LN beta
    wp_ref: (Cout, H), bp_ref: (Cout, 1)   1x1 projection
    o_ref:  (Cout, T)
    """
    pad = K // 2
    P = n_layers * pad

    x0 = x_ref[...].astype(jnp.float32)       # (Cin, Tp)
    m_full = m_ref[...].astype(jnp.float32)   # (1,  Tp)

    h = x0                    # resident activation; never leaves VMEM/vregs
    cur_off = 0               # offset of h's column 0 within the padded frame
    cur_w = T + 2 * P         # current buffer width (shrinks by 2*pad / layer)

    for layer in range(n_layers):
        m_l = m_full[:, cur_off:cur_off + cur_w]          # (1, cur_w)
        xm = h * m_l                                      # mask before conv
        w = w0_ref[...] if layer == 0 else wr_ref[layer - 1]   # (K*H, C)

        # Single MXU pass covering all K taps; z[k*H+o, j] = sum_c w[o,c,k]*xm[c,j]
        # (cast w/xm to bf16 here on v6e/v7x; kept f32 for exact ref check).
        z = jnp.dot(w, xm, preferred_element_type=jnp.float32)  # (K*H, cur_w)

        new_w = cur_w - 2 * pad
        # y[:, j] = bias + sum_k z[k*H:(k+1)*H, j + k]   (static slices only)
        y = z[0:hidden, 0:new_w] + b_ref[layer]           # (H, new_w) + (H, 1)
        for k in range(1, K):
            y = y + z[k * hidden:(k + 1) * hidden, k:k + new_w]

        # LayerNorm over the channel (sublane) axis — biased variance, like
        # F.layer_norm — then affine, then ReLU.
        mu = jnp.mean(y, axis=0, keepdims=True)           # (1, new_w)
        d = y - mu
        var = jnp.mean(d * d, axis=0, keepdims=True)
        yn = d * lax.rsqrt(var + eps)
        yn = yn * g_ref[layer] + be_ref[layer]            # (H,1) broadcasts
        h = jnp.maximum(yn, 0.0)
        # TODO(synk): dropout omitted — identity at inference / eval mode.

        cur_off += pad
        cur_w = new_w

    # cur_w == T now: 1x1 projection + residual + final mask, fused here too.
    x_core = x0[:, P:P + T]                               # (Cin, T)
    m_core = m_full[:, P:P + T]                           # (1, T)
    out = x_core + jnp.dot(wp_ref[...], h,
                           preferred_element_type=jnp.float32) + bp_ref[...]
    o_ref[...] = (out * m_core).astype(o_ref.dtype)


# ----------------------------- wrapper ---------------------------------------


def conv_relu_norm_forward(x_nct, x_mask_n1t, params):
    """Mirrors ConvReluNorm.forward.  x: (B, C_in, T), x_mask: (B, 1, T)."""
    B, Cin, T = x_nct.shape
    conv_w = params["conv_w"]                 # list of (H, C_l, K), PyTorch layout
    n_layers = len(conv_w)
    H, _, K = conv_w[0].shape
    Cout = params["proj_w"].shape[0]
    assert n_layers > 1, "Number of layers should be larger than 0."
    assert K % 2 == 1, "odd kernel_size expected for 'same' padding"
    assert Cout == Cin, "residual add requires out_channels == in_channels"

    pad = K // 2
    P = n_layers * pad
    Tp = T + 2 * P
    eps = float(params["eps"])
    f32 = jnp.float32

    # Pad time once with an n_layers*pad zero halo (mask is 0 there), so the
    # kernel never needs rolls / in-kernel padding — only static slices.
    x_p = jnp.pad(x_nct.astype(f32), ((0, 0), (0, 0), (P, P)))
    m_p = jnp.pad(x_mask_n1t.astype(f32), ((0, 0), (0, 0), (P, P)))

    # Pack per-tap conv weights into one matrix: W[k*H + o, c] = w[o, c, k].
    def pack(w):
        return jnp.transpose(w, (2, 0, 1)).reshape(K * H, w.shape[1]).astype(f32)

    w0 = pack(conv_w[0])                                          # (K*H, Cin)
    wr = jnp.stack([pack(w) for w in conv_w[1:]], axis=0)         # (L-1, K*H, H)
    bb = jnp.stack([b.reshape(H, 1) for b in params["conv_b"]], 0).astype(f32)
    gg = jnp.stack([g.reshape(H, 1) for g in params["ln_gamma"]], 0).astype(f32)
    ee = jnp.stack([e.reshape(H, 1) for e in params["ln_beta"]], 0).astype(f32)
    wp = params["proj_w"].astype(f32)                              # (Cout, H)
    bp = params["proj_b"].reshape(Cout, 1).astype(f32)             # (Cout, 1)

    kernel = functools.partial(_fused_convrelunorm_kernel, n_layers=n_layers,
                               K=K, hidden=H, eps=eps, T=T)

    # One grid step per batch element ("parallel" -> shards across v7x's 2 TCs).
    # For large B / T one would block several batch elements per step or tile
    # time with a K//2 halo; at these sizes a per-batch block is already tiny.
    return pl.pallas_call(
        kernel,
        out_shape=jax.ShapeDtypeStruct((B, Cout, T), x_nct.dtype),
        grid=(B,),
        in_specs=[
            pl.BlockSpec((None, Cin, Tp), lambda b: (b, 0, 0)),
            pl.BlockSpec((None, 1, Tp), lambda b: (b, 0, 0)),
            pl.BlockSpec((K * H, Cin), lambda b: (0, 0)),
            pl.BlockSpec((n_layers - 1, K * H, H), lambda b: (0, 0, 0)),
            pl.BlockSpec((n_layers, H, 1), lambda b: (0, 0, 0)),
            pl.BlockSpec((n_layers, H, 1), lambda b: (0, 0, 0)),
            pl.BlockSpec((n_layers, H, 1), lambda b: (0, 0, 0)),
            pl.BlockSpec((Cout, H), lambda b: (0, 0)),
            pl.BlockSpec((Cout, 1), lambda b: (0, 0)),
        ],
        out_specs=pl.BlockSpec((None, Cout, T), lambda b: (b, 0, 0)),
        compiler_params=pltpu.CompilerParams(
            dimension_semantics=("parallel",),
            vmem_limit_bytes=32 * 1024 * 1024),
    )(x_p, m_p, w0, wr, bb, gg, ee, wp, bp)


# ----------------------------- reference (plain JAX) -------------------------


def conv_relu_norm_reference(x, x_mask, params):
    """Direct NCW transcription of the PyTorch forward."""
    eps = params["eps"]
    x_org = x
    h = x
    for w, b, g, be in zip(params["conv_w"], params["conv_b"],
                           params["ln_gamma"], params["ln_beta"]):
        O, C, K = w.shape
        pad = K // 2
        T = h.shape[-1]
        xm = h * x_mask
        xp = jnp.pad(xm, ((0, 0), (0, 0), (pad, pad)))
        y = jnp.zeros((h.shape[0], O, T), jnp.float32) + b[None, :, None]
        for k in range(K):
            y = y + jnp.einsum("bct,oc->bot", xp[..., k:k + T], w[..., k])
        mu = y.mean(axis=1, keepdims=True)
        var = ((y - mu) ** 2).mean(axis=1, keepdims=True)
        y = (y - mu) / jnp.sqrt(var + eps)
        y = y * g[None, :, None] + be[None, :, None]
        h = jnp.maximum(y, 0.0)
    out = x_org + jnp.einsum("oh,bht->bot", params["proj_w"], h) \
        + params["proj_b"][None, :, None]
    return out * x_mask


# ----------------------------- main ------------------------------------------


if __name__ == "__main__":
    # module config
    in_channels = 4
    hidden_channels = 32
    out_channels = 4            # must equal in_channels for the residual add
    kernel_size = 3
    n_layers = 3
    p_dropout = 0.1             # inactive at eval time
    eps = 1e-5

    # data shapes
    B, T = 2, 16

    key = jax.random.PRNGKey(0)
    keys = jax.random.split(key, 4 * n_layers + 3)

    # deterministic synthetic parameters (PyTorch layouts)
    conv_w, conv_b, ln_g, ln_b = [], [], [], []
    cin = in_channels
    for i in range(n_layers):
        k0, k1, k2, k3 = keys[4 * i:4 * i + 4]
        conv_w.append(jax.random.normal(
            k0, (hidden_channels, cin, kernel_size), jnp.float32) * 0.1)
        conv_b.append(jax.random.normal(k1, (hidden_channels,), jnp.float32) * 0.1)
        ln_g.append(1.0 + 0.1 * jax.random.normal(k2, (hidden_channels,), jnp.float32))
        ln_b.append(0.1 * jax.random.normal(k3, (hidden_channels,), jnp.float32))
        cin = hidden_channels
    # NOTE: the PyTorch module zero-inits proj; use small random values here so
    # the projection path is actually exercised by the reference check.
    proj_w = jax.random.normal(
        keys[4 * n_layers], (out_channels, hidden_channels), jnp.float32) * 0.1
    proj_b = jax.random.normal(
        keys[4 * n_layers + 1], (out_channels,), jnp.float32) * 0.1

    params = dict(conv_w=conv_w, conv_b=conv_b, ln_gamma=ln_g, ln_beta=ln_b,
                  proj_w=proj_w, proj_b=proj_b, eps=eps)

    # inputs (PyTorch NCW layout)
    x = jax.random.normal(keys[-1], (B, in_channels, T), jnp.float32)
    lengths = jnp.array([T, T // 2], jnp.int32)
    x_mask = (jnp.arange(T)[None, None, :] < lengths[:, None, None]
              ).astype(jnp.float32)                    # (B, 1, T)

    out = conv_relu_norm_forward(x, x_mask, params)
    out = jax.block_until_ready(out)

    ref = conv_relu_norm_reference(x, x_mask, params)
    assert out.shape == (B, out_channels, T)
    assert jnp.allclose(out, ref, rtol=1e-4, atol=1e-4), "mismatch vs reference"

    print("KERNEL_OK")
</pallas_src>

<mosaic_0001>
module attributes {stable_mosaic.version = 11 : i64} {
  func.func @_fused_convrelunorm_kernel(%arg0: i32, %arg1: memref<1x4x22xf32, #tpu.memory_space<vmem>>, %arg2: memref<1x1x22xf32, #tpu.memory_space<vmem>>, %arg3: memref<96x4xf32, #tpu.memory_space<vmem>>, %arg4: memref<2x96x32xf32, #tpu.memory_space<vmem>>, %arg5: memref<3x32x1xf32, #tpu.memory_space<vmem>>, %arg6: memref<3x32x1xf32, #tpu.memory_space<vmem>>, %arg7: memref<3x32x1xf32, #tpu.memory_space<vmem>>, %arg8: memref<4x32xf32, #tpu.memory_space<vmem>>, %arg9: memref<4x1xf32, #tpu.memory_space<vmem>>, %arg10: memref<1x4x16xf32, #tpu.memory_space<vmem>>) attributes {dimension_semantics = [#tpu.dimension_semantics<parallel>], iteration_bounds = array<i64: 2>, scalar_prefetch = 0 : i64, scratch_operands = 0 : i64, tpu.core_type = #tpu.core_type<tc>, window_params = [{transform_indices = @transform_0, window_bounds = array<i64: 1, 4, 22>}, {transform_indices = @transform_1, window_bounds = array<i64: 1, 1, 22>}, {pipeline_mode = #tpu.pipeline_mode<synchronous>, transform_indices = @transform_2, window_bounds = array<i64: 96, 4>}, {pipeline_mode = #tpu.pipeline_mode<synchronous>, transform_indices = @transform_3, window_bounds = array<i64: 2, 96, 32>}, {pipeline_mode = #tpu.pipeline_mode<synchronous>, transform_indices = @transform_4, window_bounds = array<i64: 3, 32, 1>}, {pipeline_mode = #tpu.pipeline_mode<synchronous>, transform_indices = @transform_5, window_bounds = array<i64: 3, 32, 1>}, {pipeline_mode = #tpu.pipeline_mode<synchronous>, transform_indices = @transform_6, window_bounds = array<i64: 3, 32, 1>}, {pipeline_mode = #tpu.pipeline_mode<synchronous>, transform_indices = @transform_7, window_bounds = array<i64: 4, 32>}, {pipeline_mode = #tpu.pipeline_mode<synchronous>, transform_indices = @transform_8, window_bounds = array<i64: 4, 1>}, {transform_indices = @transform_9, window_bounds = array<i64: 1, 4, 16>}]} {
    %c0 = arith.constant 0 : index
    %c0_0 = arith.constant 0 : index
    %c0_1 = arith.constant 0 : index
    %0 = vector.load %arg1[%c0, %c0_0, %c0_1] : memref<1x4x22xf32, #tpu.memory_space<vmem>>, vector<1x4x22xf32>
    %1 = vector.shape_cast %0 : vector<1x4x22xf32> to vector<4x22xf32>
    %c0_2 = arith.constant 0 : index
    %c0_3 = arith.constant 0 : index
    %c0_4 = arith.constant 0 : index
    %2 = vector.load %arg2[%c0_2, %c0_3, %c0_4] : memref<1x1x22xf32, #tpu.memory_space<vmem>>, vector<1x1x22xf32>
    %3 = vector.shape_cast %2 : vector<1x1x22xf32> to vector<1x22xf32>
    %4 = vector.broadcast %3 : vector<1x22xf32> to vector<4x22xf32>
    %5 = arith.mulf %1, %4 : vector<4x22xf32>
    %c0_5 = arith.constant 0 : index
    %c0_6 = arith.constant 0 : index
    %6 = vector.load %arg3[%c0_5, %c0_6] : memref<96x4xf32, #tpu.memory_space<vmem>>, vector<96x4xf32>
    %cst = arith.constant dense<0.000000e+00> : vector<96x22xf32>
    %7 = tpu.matmul %6, %5, %cst {dimension_numbers = #tpu.dot_dimension_numbers<[1], [0], [0], [1], [0, 0, 1, 1], [], []>} : vector<96x4xf32>, vector<4x22xf32>, vector<96x22xf32> -> vector<96x22xf32>
    %8 = vector.extract_strided_slice %7 {offsets = [0, 0], sizes = [32, 20], strides = [1, 1]} : vector<96x22xf32> to vector<32x20xf32>
    %c0_7 = arith.constant 0 : index
    %c0_8 = arith.constant 0 : index
    %c0_9 = arith.constant 0 : index
    %9 = vector.load %arg5[%c0_7, %c0_8, %c0_9] : memref<3x32x1xf32, #tpu.memory_space<vmem>>, vector<1x32x1xf32>
    %10 = vector.shape_cast %9 : vector<1x32x1xf32> to vector<32x1xf32>
    %11 = vector.broadcast %10 : vector<32x1xf32> to vector<32x20xf32>
    %12 = arith.addf %8, %11 : vector<32x20xf32>
    %13 = vector.extract_strided_slice %7 {offsets = [32, 1], sizes = [32, 20], strides = [1, 1]} : vector<96x22xf32> to vector<32x20xf32>
    %14 = arith.addf %12, %13 : vector<32x20xf32>
    %15 = vector.extract_strided_slice %7 {offsets = [64, 2], sizes = [32, 20], strides = [1, 1]} : vector<96x22xf32> to vector<32x20xf32>
    %16 = arith.addf %14, %15 : vector<32x20xf32>
    %cst_10 = arith.constant dense<0.000000e+00> : vector<20xf32>
    %17 = vector.multi_reduction <add>, %16, %cst_10 [0] : vector<32x20xf32> to vector<20xf32>
    %18 = vector.shape_cast %17 : vector<20xf32> to vector<1x20xf32>
    %cst_11 = arith.constant 3.200000e+01 : f32
    %19 = vector.broadcast %cst_11 : f32 to vector<1x20xf32>
    %20 = arith.divf %18, %19 : vector<1x20xf32>
    %21 = vector.broadcast %20 : vector<1x20xf32> to vector<32x20xf32>
    %22 = arith.subf %16, %21 : vector<32x20xf32>
    %23 = arith.mulf %22, %22 : vector<32x20xf32>
    %cst_12 = arith.constant dense<0.000000e+00> : vector<20xf32>
    %24 = vector.multi_reduction <add>, %23, %cst_12 [0] : vector<32x20xf32> to vector<20xf32>
    %25 = vector.shape_cast %24 : vector<20xf32> to vector<1x20xf32>
    %cst_13 = arith.constant 3.200000e+01 : f32
    %26 = vector.broadcast %cst_13 : f32 to vector<1x20xf32>
    %27 = arith.divf %25, %26 : vector<1x20xf32>
    %cst_14 = arith.constant 9.99999974E-6 : f32
    %28 = vector.broadcast %cst_14 : f32 to vector<1x20xf32>
    %29 = arith.addf %27, %28 : vector<1x20xf32>
    %30 = math.rsqrt %29 : vector<1x20xf32>
    %31 = vector.broadcast %30 : vector<1x20xf32> to vector<32x20xf32>
    %32 = arith.mulf %22, %31 : vector<32x20xf32>
    %c0_15 = arith.constant 0 : index
    %c0_16 = arith.constant 0 : index
    %c0_17 = arith.constant 0 : index
    %33 = vector.load %arg6[%c0_15, %c0_16, %c0_17] : memref<3x32x1xf32, #tpu.memory_space<vmem>>, vector<1x32x1xf32>
    %34 = vector.shape_cast %33 : vector<1x32x1xf32> to vector<32x1xf32>
    %35 = vector.broadcast %34 : vector<32x1xf32> to vector<32x20xf32>
    %36 = arith.mulf %32, %35 : vector<32x20xf32>
    %c0_18 = arith.constant 0 : index
    %c0_19 = arith.constant 0 : index
    %c0_20 = arith.constant 0 : index
    %37 = vector.load %arg7[%c0_18, %c0_19, %c0_20] : memref<3x32x1xf32, #tpu.memory_space<vmem>>, vector<1x32x1xf32>
    %38 = vector.shape_cast %37 : vector<1x32x1xf32> to vector<32x1xf32>
    %39 = vector.broadcast %38 : vector<32x1xf32> to vector<32x20xf32>
    %40 = arith.addf %36, %39 : vector<32x20xf32>
    %cst_21 = arith.constant 0.000000e+00 : f32
    %41 = vector.broadcast %cst_21 : f32 to vector<32x20xf32>
    %42 = arith.maximumf %40, %41 : vector<32x20xf32>
    %43 = vector.extract_strided_slice %3 {offsets = [0, 1], sizes = [1, 20], strides = [1, 1]} : vector<1x22xf32> to vector<1x20xf32>
    %44 = vector.broadcast %43 : vector<1x20xf32> to vector<32x20xf32>
    %45 = arith.mulf %42, %44 : vector<32x20xf32>
    %c0_22 = arith.constant 0 : index
    %c0_23 = arith.constant 0 : index
    %c0_24 = arith.constant 0 : index
    %46 = vector.load %arg4[%c0_22, %c0_23, %c0_24] : memref<2x96x32xf32, #tpu.memory_space<vmem>>, vector<1x96x32xf32>
    %47 = vector.shape_cast %46 : vector<1x96x32xf32> to vector<96x32xf32>
    %cst_25 = arith.constant dense<0.000000e+00> : vector<96x20xf32>
    %48 = tpu.matmul %47, %45, %cst_25 {dimension_numbers = #tpu.dot_dimension_numbers<[1], [0], [0], [1], [0, 0, 1, 1], [], []>} : vector<96x32xf32>, vector<32x20xf32>, vector<96x20xf32> -> vector<96x20xf32>
    %49 = vector.extract_strided_slice %48 {offsets = [0, 0], sizes = [32, 18], strides = [1, 1]} : vector<96x20xf32> to vector<32x18xf32>
    %c1 = arith.constant 1 : index
    %c0_26 = arith.constant 0 : index
    %c0_27 = arith.constant 0 : index
    %50 = vector.load %arg5[%c1, %c0_26, %c0_27] : memref<3x32x1xf32, #tpu.memory_space<vmem>>, vector<1x32x1xf32>
    %51 = vector.shape_cast %50 : vector<1x32x1xf32> to vector<32x1xf32>
    %52 = vector.broadcast %51 : vector<32x1xf32> to vector<32x18xf32>
    %53 = arith.addf %49, %52 : vector<32x18xf32>
    %54 = vector.extract_strided_slice %48 {offsets = [32, 1], sizes = [32, 18], strides = [1, 1]} : vector<96x20xf32> to vector<32x18xf32>
    %55 = arith.addf %53, %54 : vector<32x18xf32>
    %56 = vector.extract_strided_slice %48 {offsets = [64, 2], sizes = [32, 18], strides = [1, 1]} : vector<96x20xf32> to vector<32x18xf32>
    %57 = arith.addf %55, %56 : vector<32x18xf32>
    %cst_28 = arith.constant dense<0.000000e+00> : vector<18xf32>
    %58 = vector.multi_reduction <add>, %57, %cst_28 [0] : vector<32x18xf32> to vector<18xf32>
    %59 = vector.shape_cast %58 : vector<18xf32> to vector<1x18xf32>
    %cst_29 = arith.constant 3.200000e+01 : f32
    %60 = vector.broadcast %cst_29 : f32 to vector<1x18xf32>
    %61 = arith.divf %59, %60 : vector<1x18xf32>
    %62 = vector.broadcast %61 : vector<1x18xf32> to vector<32x18xf32>
    %63 = arith.subf %57, %62 : vector<32x18xf32>
    %64 = arith.mulf %63, %63 : vector<32x18xf32>
    %cst_30 = arith.constant dense<0.000000e+00> : vector<18xf32>
    %65 = vector.multi_reduction <add>, %64, %cst_30 [0] : vector<32x18xf32> to vector<18xf32>
    %66 = vector.shape_cast %65 : vector<18xf32> to vector<1x18xf32>
    %cst_31 = arith.constant 3.200000e+01 : f32
    %67 = vector.broadcast %cst_31 : f32 to vector<1x18xf32>
    %68 = arith.divf %66, %67 : vector<1x18xf32>
    %cst_32 = arith.constant 9.99999974E-6 : f32
    %69 = vector.broadcast %cst_32 : f32 to vector<1x18xf32>
    %70 = arith.addf %68, %69 : vector<1x18xf32>
    %71 = math.rsqrt %70 : vector<1x18xf32>
    %72 = vector.broadcast %71 : vector<1x18xf32> to vector<32x18xf32>
    %73 = arith.mulf %63, %72 : vector<32x18xf32>
    %c1_33 = arith.constant 1 : index
    %c0_34 = arith.constant 0 : index
    %c0_35 = arith.constant 0 : index
    %74 = vector.load %arg6[%c1_33, %c0_34, %c0_35] : memref<3x32x1xf32, #tpu.memory_space<vmem>>, vector<1x32x1xf32>
    %75 = vector.shape_cast %74 : vector<1x32x1xf32> to vector<32x1xf32>
    %76 = vector.broadcast %75 : vector<32x1xf32> to vector<32x18xf32>
    %77 = arith.mulf %73, %76 : vector<32x18xf32>
    %c1_36 = arith.constant 1 : index
    %c0_37 = arith.constant 0 : index
    %c0_38 = arith.constant 0 : index
    %78 = vector.load %arg7[%c1_36, %c0_37, %c0_38] : memref<3x32x1xf32, #tpu.memory_space<vmem>>, vector<1x32x1xf32>
    %79 = vector.shape_cast %78 : vector<1x32x1xf32> to vector<32x1xf32>
    %80 = vector.broadcast %79 : vector<32x1xf32> to vector<32x18xf32>
    %81 = arith.addf %77, %80 : vector<32x18xf32>
    %cst_39 = arith.constant 0.000000e+00 : f32
    %82 = vector.broadcast %cst_39 : f32 to vector<32x18xf32>
    %83 = arith.maximumf %81, %82 : vector<32x18xf32>
    %84 = vector.extract_strided_slice %3 {offsets = [0, 2], sizes = [1, 18], strides = [1, 1]} : vector<1x22xf32> to vector<1x18xf32>
    %85 = vector.broadcast %84 : vector<1x18xf32> to vector<32x18xf32>
    %86 = arith.mulf %83, %85 : vector<32x18xf32>
    %c1_40 = arith.constant 1 : index
    %c0_41 = arith.constant 0 : index
    %c0_42 = arith.constant 0 : index
    %87 = vector.load %arg4[%c1_40, %c0_41, %c0_42] : memref<2x96x32xf32, #tpu.memory_space<vmem>>, vector<1x96x32xf32>
    %88 = vector.shape_cast %87 : vector<1x96x32xf32> to vector<96x32xf32>
    %cst_43 = arith.constant dense<0.000000e+00> : vector<96x18xf32>
    %89 = tpu.matmul %88, %86, %cst_43 {dimension_numbers = #tpu.dot_dimension_numbers<[1], [0], [0], [1], [0, 0, 1, 1], [], []>} : vector<96x32xf32>, vector<32x18xf32>, vector<96x18xf32> -> vector<96x18xf32>
    %90 = vector.extract_strided_slice %89 {offsets = [0, 0], sizes = [32, 16], strides = [1, 1]} : vector<96x18xf32> to vector<32x16xf32>
    %c2 = arith.constant 2 : index
    %c0_44 = arith.constant 0 : index
    %c0_45 = arith.constant 0 : index
    %91 = vector.load %arg5[%c2, %c0_44, %c0_45] : memref<3x32x1xf32, #tpu.memory_space<vmem>>, vector<1x32x1xf32>
    %92 = vector.shape_cast %91 : vector<1x32x1xf32> to vector<32x1xf32>
    %93 = vector.broadcast %92 : vector<32x1xf32> to vector<32x16xf32>
    %94 = arith.addf %90, %93 : vector<32x16xf32>
    %95 = vector.extract_strided_slice %89 {offsets = [32, 1], sizes = [32, 16], strides = [1, 1]} : vector<96x18xf32> to vector<32x16xf32>
    %96 = arith.addf %94, %95 : vector<32x16xf32>
    %97 = vector.extract_strided_slice %89 {offsets = [64, 2], sizes = [32, 16], strides = [1, 1]} : vector<96x18xf32> to vector<32x16xf32>
    %98 = arith.addf %96, %97 : vector<32x16xf32>
    %cst_46 = arith.constant dense<0.000000e+00> : vector<16xf32>
    %99 = vector.multi_reduction <add>, %98, %cst_46 [0] : vector<32x16xf32> to vector<16xf32>
    %100 = vector.shape_cast %99 : vector<16xf32> to vector<1x16xf32>
    %cst_47 = arith.constant 3.200000e+01 : f32
    %101 = vector.broadcast %cst_47 : f32 to vector<1x16xf32>
    %102 = arith.divf %100, %101 : vector<1x16xf32>
    %103 = vector.broadcast %102 : vector<1x16xf32> to vector<32x16xf32>
    %104 = arith.subf %98, %103 : vector<32x16xf32>
    %105 = arith.mulf %104, %104 : vector<32x16xf32>
    %cst_48 = arith.constant dense<0.000000e+00> : vector<16xf32>
    %106 = vector.multi_reduction <add>, %105, %cst_48 [0] : vector<32x16xf32> to vector<16xf32>
    %107 = vector.shape_cast %106 : vector<16xf32> to vector<1x16xf32>
    %cst_49 = arith.constant 3.200000e+01 : f32
    %108 = vector.broadcast %cst_49 : f32 to vector<1x16xf32>
    %109 = arith.divf %107, %108 : vector<1x16xf32>
    %cst_50 = arith.constant 9.99999974E-6 : f32
    %110 = vector.broadcast %cst_50 : f32 to vector<1x16xf32>
    %111 = arith.addf %109, %110 : vector<1x16xf32>
    %112 = math.rsqrt %111 : vector<1x16xf32>
    %113 = vector.broadcast %112 : vector<1x16xf32> to vector<32x16xf32>
    %114 = arith.mulf %104, %113 : vector<32x16xf32>
    %c2_51 = arith.constant 2 : index
    %c0_52 = arith.constant 0 : index
    %c0_53 = arith.constant 0 : index
    %115 = vector.load %arg6[%c2_51, %c0_52, %c0_53] : memref<3x32x1xf32, #tpu.memory_space<vmem>>, vector<1x32x1xf32>
    %116 = vector.shape_cast %115 : vector<1x32x1xf32> to vector<32x1xf32>
    %117 = vector.broadcast %116 : vector<32x1xf32> to vector<32x16xf32>
    %118 = arith.mulf %114, %117 : vector<32x16xf32>
    %c2_54 = arith.constant 2 : index
    %c0_55 = arith.constant 0 : index
    %c0_56 = arith.constant 0 : index
    %119 = vector.load %arg7[%c2_54, %c0_55, %c0_56] : memref<3x32x1xf32, #tpu.memory_space<vmem>>, vector<1x32x1xf32>
    %120 = vector.shape_cast %119 : vector<1x32x1xf32> to vector<32x1xf32>
    %121 = vector.broadcast %120 : vector<32x1xf32> to vector<32x16xf32>
    %122 = arith.addf %118, %121 : vector<32x16xf32>
    %cst_57 = arith.constant 0.000000e+00 : f32
    %123 = vector.broadcast %cst_57 : f32 to vector<32x16xf32>
    %124 = arith.maximumf %122, %123 : vector<32x16xf32>
    %125 = vector.extract_strided_slice %1 {offsets = [0, 3], sizes = [4, 16], strides = [1, 1]} : vector<4x22xf32> to vector<4x16xf32>
    %126 = vector.extract_strided_slice %3 {offsets = [0, 3], sizes = [1, 16], strides = [1, 1]} : vector<1x22xf32> to vector<1x16xf32>
    %c0_58 = arith.constant 0 : index
    %c0_59 = arith.constant 0 : index
    %127 = vector.load %arg8[%c0_58, %c0_59] : memref<4x32xf32, #tpu.memory_space<vmem>>, vector<4x32xf32>
    %cst_60 = arith.constant dense<0.000000e+00> : vector<4x16xf32>
    %128 = tpu.matmul %127, %124, %cst_60 {dimension_numbers = #tpu.dot_dimension_numbers<[1], [0], [0], [1], [0, 0, 1, 1], [], []>} : vector<4x32xf32>, vector<32x16xf32>, vector<4x16xf32> -> vector<4x16xf32>
    %129 = arith.addf %125, %128 : vector<4x16xf32>
    %c0_61 = arith.constant 0 : index
    %c0_62 = arith.constant 0 : index
    %130 = vector.load %arg9[%c0_61, %c0_62] : memref<4x1xf32, #tpu.memory_space<vmem>>, vector<4x1xf32>
    %131 = vector.broadcast %130 : vector<4x1xf32> to vector<4x16xf32>
    %132 = arith.addf %129, %131 : vector<4x16xf32>
    %133 = vector.broadcast %126 : vector<1x16xf32> to vector<4x16xf32>
    %134 = arith.mulf %132, %133 : vector<4x16xf32>
    %c0_63 = arith.constant 0 : index
    %c0_64 = arith.constant 0 : index
    %c0_65 = arith.constant 0 : index
    %135 = vector.load %arg10[%c0_63, %c0_64, %c0_65] : memref<1x4x16xf32, #tpu.memory_space<vmem>>, vector<1x4x16xf32>
    %136 = vector.shape_cast %135 : vector<1x4x16xf32> to vector<4x16xf32>
    %137 = vector.shape_cast %134 : vector<4x16xf32> to vector<1x4x16xf32>
    tpu.vector_store %arg10[%c0_63, %c0_64, %c0_65], %137 {strides = array<i32>} : memref<1x4x16xf32, #tpu.memory_space<vmem>>, vector<1x4x16xf32>,
    return
  }
  func.func @transform_0(%arg0: i32) -> (i32, i32, i32) {
    %c0_i32 = arith.constant 0 : i32
    %c0_i32_0 = arith.constant 0 : i32
    %c0_i32_1 = arith.constant 0 : i32
    return %arg0, %c0_i32, %c0_i32_0 : i32, i32, i32
  }
  func.func @transform_1(%arg0: i32) -> (i32, i32, i32) {
    %c0_i32 = arith.constant 0 : i32
    %c0_i32_0 = arith.constant 0 : i32
    %c0_i32_1 = arith.constant 0 : i32
    return %arg0, %c0_i32, %c0_i32_0 : i32, i32, i32
  }
  func.func @transform_2(%arg0: i32) -> (i32, i32) {
    %c0_i32 = arith.constant 0 : i32
    %c0_i32_0 = arith.constant 0 : i32
    %c0_i32_1 = arith.constant 0 : i32
    return %c0_i32, %c0_i32_0 : i32, i32
  }
  func.func @transform_3(%arg0: i32) -> (i32, i32, i32) {
    %c0_i32 = arith.constant 0 : i32
    %c0_i32_0 = arith.constant 0 : i32
    %c0_i32_1 = arith.constant 0 : i32
    %c0_i32_2 = arith.constant 0 : i32
    return %c0_i32, %c0_i32_0, %c0_i32_1 : i32, i32, i32
  }
  func.func @transform_4(%arg0: i32) -> (i32, i32, i32) {
    %c0_i32 = arith.constant 0 : i32
    %c0_i32_0 = arith.constant 0 : i32
    %c0_i32_1 = arith.constant 0 : i32
    %c0_i32_2 = arith.constant 0 : i32
    return %c0_i32, %c0_i32_0, %c0_i32_1 : i32, i32, i32
  }
  func.func @transform_5(%arg0: i32) -> (i32, i32, i32) {
    %c0_i32 = arith.constant 0 : i32
    %c0_i32_0 = arith.constant 0 : i32
    %c0_i32_1 = arith.constant 0 : i32
    %c0_i32_2 = arith.constant 0 : i32
    return %c0_i32, %c0_i32_0, %c0_i32_1 : i32, i32, i32
  }
  func.func @transform_6(%arg0: i32) -> (i32, i32, i32) {
    %c0_i32 = arith.constant 0 : i32
    %c0_i32_0 = arith.constant 0 : i32
    %c0_i32_1 = arith.constant 0 : i32
    %c0_i32_2 = arith.constant 0 : i32
    return %c0_i32, %c0_i32_0, %c0_i32_1 : i32, i32, i32
  }
  func.func @transform_7(%arg0: i32) -> (i32, i32) {
    %c0_i32 = arith.constant 0 : i32
    %c0_i32_0 = arith.constant 0 : i32
    %c0_i32_1 = arith.constant 0 : i32
    return %c0_i32, %c0_i32_0 : i32, i32
  }
  func.func @transform_8(%arg0: i32) -> (i32, i32) {
    %c0_i32 = arith.constant 0 : i32
    %c0_i32_0 = arith.constant 0 : i32
    %c0_i32_1 = arith.constant 0 : i32
    return %c0_i32, %c0_i32_0 : i32, i32
  }
  func.func @transform_9(%arg0: i32) -> (i32, i32, i32) {
    %c0_i32 = arith.constant 0 : i32
    %c0_i32_0 = arith.constant 0 : i32
    %c0_i32_1 = arith.constant 0 : i32
    return %arg0, %c0_i32, %c0_i32_0 : i32, i32, i32
  }
}

</mosaic_0001>

<llo_original>
// kernel: tpu_custom_call.1
$region0: #{tpu_custom_call.1}
  #allocation0 [shape = 'u32[]', space=smem, size = 0x4, offset = 0x4, fixed_abs, tag = 'smem constant byte address 0x4 - core index']
  #allocation1 [shape = 'u32[144,128]{1,0:T(1,128)}', space=vmem, size = 0x12000, scoped, tag = 'internal scratch']
  %s0 = inlined_call_operand.vmem [shape: f32[2,4,22], index: 0, kind: input, shape index: {}]
  %s1 = inlined_call_operand.vmem [shape: f32[2,1,22], index: 1, kind: input, shape index: {}]
  %s2 = inlined_call_operand.vmem [shape: f32[96,4], index: 2, kind: input, shape index: {}]
  %s3 = inlined_call_operand.vmem [shape: f32[2,96,32], index: 3, kind: input, shape index: {}]
  %s4 = inlined_call_operand.vmem [shape: f32[3,32,1], index: 4, kind: input, shape index: {}]
  %s5 = inlined_call_operand.vmem [shape: f32[3,32,1], index: 5, kind: input, shape index: {}]
  %s6 = inlined_call_operand.vmem [shape: f32[3,32,1], index: 6, kind: input, shape index: {}]
  %s7 = inlined_call_operand.vmem [shape: f32[4,32], index: 7, kind: input, shape index: {}]
  %s8 = inlined_call_operand.vmem [shape: f32[4,1], index: 8, kind: input, shape index: {}]
  %s9 = inlined_call_operand.hbm [shape: f32[2,4,16], index: 9, kind: output, shape index: {}]
  %s10 = sld [smem:[#allocation0]]
  $region69: #{tpu_custom_call.1} parent=0
    _
  %s12 = ssub.s32 1, %s10
  %s13 = scalar_select 0, %s12, %s10
  $region1: #{tpu_custom_call.1} parent=0
    #allocation2 [shape = 'u8[4096]{0}', space=vmem, size = 0x1000, scoped, tag = 'output window, operand 0']
    #allocation3 [shape = 's32[2]{0}', space=sflag, size = 0x8, scoped, tag = 'scoped memory for tpu_custom_call.1']
    %14 = vsyncpa [#allocation3], 0
    %s15 = scalar_lea.sflag [#allocation3], 1
    %16 = vsyncpa %s15, 0
    loop: start=0, step=1, limit=4
    $region2: #{tpu_custom_call.1} parent=1 // loop_pre_header
      _
    $region3: #{tpu_custom_call.1} parent=1 // loop_header
      %s18 = sphi 0, %s22
      %p19 = scmp.ge.s32.totalorder %s18, 4
      %s28 = sphi 0, %s30
      %s31 = sphi 0, %s28
      %s32 = sphi 0, %s31
      %s48 = sphi 0, %s32
      %s54 = sphi 0, %s56
      %s57 = sphi 0, %s54
      %s58 = sphi 0, %s57
      %s74 = sphi 0, %s58
      %s78 = sphi 0, %s78
      %s80 = sphi 0, %s78
      %s81 = sphi 0, %s80
      %s95 = sphi 0, %s81
      %s99 = sphi 0, %s99
      %s101 = sphi 0, %s99
      %s102 = sphi 0, %s101
      %s116 = sphi 0, %s102
      %s120 = sphi 0, %s120
      %s122 = sphi 0, %s120
      %s123 = sphi 0, %s122
      %s137 = sphi 0, %s123
      %s141 = sphi 0, %s141
      %s143 = sphi 0, %s141
      %s144 = sphi 0, %s143
      %s158 = sphi 0, %s144
      %s162 = sphi 0, %s162
      %s164 = sphi 0, %s162
      %s165 = sphi 0, %s164
      %s179 = sphi 0, %s165
      %s183 = sphi 0, %s183
      %s185 = sphi 0, %s183
      %s186 = sphi 0, %s185
      %s200 = sphi 0, %s186
      %s204 = sphi 0, %s204
      %s206 = sphi 0, %s204
      %s207 = sphi 0, %s206
      %s221 = sphi 0, %s207
      %s227 = sphi 0, %s229
      %s230 = sphi 0, %s227
      %s231 = sphi 0, %s230
      %s247 = sphi 0, %s231
    $region4: #{tpu_custom_call.1} parent=1 // loop_header_branch
      %21 = sbr.rel (%p19) target = $region8
    $region5: #{tpu_custom_call.1} parent=1 // loop_body
      %s23 = ssub.s32 %s18, 1
      %s24 = ssub.s32 %s18, 2
      %s25 = sadd.s32 %s18, 1
      %s26 = ssub.s32 %s18, %s25
      %p27 = scmp.eq.s32.totalorder %s26, 0
      %s29 = sadd.s32 %s28, 1
      %s30 = scalar_select %p27, %s28, %s29
      %p33 = pneg %p27
      %p34 = scmp.eq.s32.totalorder %s18, 1
      %p35 = por %p33, %p34
      %p36 = scmp.ne.s32.totalorder %s28, %s31
      %p37 = scmp.eq.s32.totalorder %s18, 0
      %p38 = por %p36, %p37
      %p39 = scmp.ne.s32.totalorder %s28, %s31
      %p40 = scmp.eq.s32.totalorder %s23, 1
      %p41 = por %p39, %p40
      %p42 = scmp.ne.s32.totalorder %s31, %s32
      %p43 = scmp.eq.s32.totalorder %s23, 0
      %p44 = por %p42, %p43
      %p45 = scmp.ne.s32.totalorder %s31, %s32
      %p46 = scmp.eq.s32.totalorder %s24, 1
      %p47 = por %p45, %p46
      %p49 = scmp.ne.s32.totalorder %s32, %s48
      %p50 = scmp.eq.s32.totalorder %s24, 0
      %p51 = por %p49, %p50
      %s52 = ssub.s32 %s18, %s25
      %p53 = scmp.eq.s32.totalorder %s52, 0
      %s55 = sadd.s32 %s54, 1
      %s56 = scalar_select %p53, %s54, %s55
      %p59 = pneg %p53
      %p60 = scmp.eq.s32.totalorder %s18, 1
      %p61 = por %p59, %p60
      %p62 = scmp.ne.s32.totalorder %s54, %s57
      %p63 = scmp.eq.s32.totalorder %s18, 0
      %p64 = por %p62, %p63
      %p65 = scmp.ne.s32.totalorder %s54, %s57
      %p66 = scmp.eq.s32.totalorder %s23, 1
      %p67 = por %p65, %p66
      %p68 = scmp.ne.s32.totalorder %s57, %s58
      %p69 = scmp.eq.s32.totalorder %s23, 0
      %p70 = por %p68, %p69
      %p71 = scmp.ne.s32.totalorder %s57, %s58
      %p72 = scmp.eq.s32.totalorder %s24, 1
      %p73 = por %p71, %p72
      %p75 = scmp.ne.s32.totalorder %s58, %s74
      %p76 = scmp.eq.s32.totalorder %s24, 0
      %p77 = por %p75, %p76
      %s79 = sadd.s32 %s78, 1
      %p82 = scmp.eq.s32.totalorder %s18, 1
      %p83 = scmp.ne.s32.totalorder %s78, %s80
      %p84 = scmp.eq.s32.totalorder %s18, 0
      %p85 = por %p83, %p84
      %p86 = scmp.ne.s32.totalorder %s78, %s80
      %p87 = scmp.eq.s32.totalorder %s23, 1
      %p88 = por %p86, %p87
      %p89 = scmp.ne.s32.totalorder %s80, %s81
      %p90 = scmp.eq.s32.totalorder %s23, 0
      %p91 = por %p89, %p90
      %p92 = scmp.ne.s32.totalorder %s80, %s81
      %p93 = scmp.eq.s32.totalorder %s24, 1
      %p94 = por %p92, %p93
      %p96 = scmp.ne.s32.totalorder %s81, %s95
      %p97 = scmp.eq.s32.totalorder %s24, 0
      %p98 = por %p96, %p97
      %s100 = sadd.s32 %s99, 1
      %p103 = scmp.eq.s32.totalorder %s18, 1
      %p104 = scmp.ne.s32.totalorder %s99, %s101
      %p105 = scmp.eq.s32.totalorder %s18, 0
      %p106 = por %p104, %p105
      %p107 = scmp.ne.s32.totalorder %s99, %s101
      %p108 = scmp.eq.s32.totalorder %s23, 1
      %p109 = por %p107, %p108
      %p110 = scmp.ne.s32.totalorder %s101, %s102
      %p111 = scmp.eq.s32.totalorder %s23, 0
      %p112 = por %p110, %p111
      %p113 = scmp.ne.s32.totalorder %s101, %s102
      %p114 = scmp.eq.s32.totalorder %s24, 1
      %p115 = por %p113, %p114
      %p117 = scmp.ne.s32.totalorder %s102, %s116
      %p118 = scmp.eq.s32.totalorder %s24, 0
      %p119 = por %p117, %p118
      %s121 = sadd.s32 %s120, 1
      %p124 = scmp.eq.s32.totalorder %s18, 1
      %p125 = scmp.ne.s32.totalorder %s120, %s122
      %p126 = scmp.eq.s32.totalorder %s18, 0
      %p127 = por %p125, %p126
      %p128 = scmp.ne.s32.totalorder %s120, %s122
      %p129 = scmp.eq.s32.totalorder %s23, 1
      %p130 = por %p128, %p129
      %p131 = scmp.ne.s32.totalorder %s122, %s123
      %p132 = scmp.eq.s32.totalorder %s23, 0
      %p133 = por %p131, %p132
      %p134 = scmp.ne.s32.totalorder %s122, %s123
      %p135 = scmp.eq.s32.totalorder %s24, 1
      %p136 = por %p134, %p135
      %p138 = scmp.ne.s32.totalorder %s123, %s137
      %p139 = scmp.eq.s32.totalorder %s24, 0
      %p140 = por %p138, %p139
      %s142 = sadd.s32 %s141, 1
      %p145 = scmp.eq.s32.totalorder %s18, 1
      %p146 = scmp.ne.s32.totalorder %s141, %s143
      %p147 = scmp.eq.s32.totalorder %s18, 0
      %p148 = por %p146, %p147
      %p149 = scmp.ne.s32.totalorder %s141, %s143
      %p150 = scmp.eq.s32.totalorder %s23, 1
      %p151 = por %p149, %p150
      %p152 = scmp.ne.s32.totalorder %s143, %s144
      %p153 = scmp.eq.s32.totalorder %s23, 0
      %p154 = por %p152, %p153
      %p155 = scmp.ne.s32.totalorder %s143, %s144
      %p156 = scmp.eq.s32.totalorder %s24, 1
      %p157 = por %p155, %p156
      %p159 = scmp.ne.s32.totalorder %s144, %s158
      %p160 = scmp.eq.s32.totalorder %s24, 0
      %p161 = por %p159, %p160
      %s163 = sadd.s32 %s162, 1
      %p166 = scmp.eq.s32.totalorder %s18, 1
      %p167 = scmp.ne.s32.totalorder %s162, %s164
      %p168 = scmp.eq.s32.totalorder %s18, 0
      %p169 = por %p167, %p168
      %p170 = scmp.ne.s32.totalorder %s162, %s164
      %p171 = scmp.eq.s32.totalorder %s23, 1
      %p172 = por %p170, %p171
      %p173 = scmp.ne.s32.totalorder %s164, %s165
      %p174 = scmp.eq.s32.totalorder %s23, 0
      %p175 = por %p173, %p174
      %p176 = scmp.ne.s32.totalorder %s164, %s165
      %p177 = scmp.eq.s32.totalorder %s24, 1
      %p178 = por %p176, %p177
      %p180 = scmp.ne.s32.totalorder %s165, %s179
      %p181 = scmp.eq.s32.totalorder %s24, 0
      %p182 = por %p180, %p181
      %s184 = sadd.s32 %s183, 1
      %p187 = scmp.eq.s32.totalorder %s18, 1
      %p188 = scmp.ne.s32.totalorder %s183, %s185
      %p189 = scmp.eq.s32.totalorder %s18, 0
      %p190 = por %p188, %p189
      %p191 = scmp.ne.s32.totalorder %s183, %s185
      %p192 = scmp.eq.s32.totalorder %s23, 1
      %p193 = por %p191, %p192
      %p194 = scmp.ne.s32.totalorder %s185, %s186
      %p195 = scmp.eq.s32.totalorder %s23, 0
      %p196 = por %p194, %p195
      %p197 = scmp.ne.s32.totalorder %s185, %s186
      %p198 = scmp.eq.s32.totalorder %s24, 1
      %p199 = por %p197, %p198
      %p201 = scmp.ne.s32.totalorder %s186, %s200
      %p202 = scmp.eq.s32.totalorder %s24, 0
      %p203 = por %p201, %p202
      %s205 = sadd.s32 %s204, 1
      %p208 = scmp.eq.s32.totalorder %s18, 1
      %p209 = scmp.ne.s32.totalorder %s204, %s206
      %p210 = scmp.eq.s32.totalorder %s18, 0
      %p211 = por %p209, %p210
      %p212 = scmp.ne.s32.totalorder %s204, %s206
      %p213 = scmp.eq.s32.totalorder %s23, 1
      %p214 = por %p212, %p213
      %p215 = scmp.ne.s32.totalorder %s206, %s207
      %p216 = scmp.eq.s32.totalorder %s23, 0
      %p217 = por %p215, %p216
      %p218 = scmp.ne.s32.totalorder %s206, %s207
      %p219 = scmp.eq.s32.totalorder %s24, 1
      %p220 = por %p218, %p219
      %p222 = scmp.ne.s32.totalorder %s207, %s221
      %p223 = scmp.eq.s32.totalorder %s24, 0
      %p224 = por %p222, %p223
      %s225 = ssub.s32 %s18, %s25
      %p226 = scmp.eq.s32.totalorder %s225, 0
      %s228 = sadd.s32 %s227, 1
      %s229 = scalar_select %p226, %s227, %s228
      %p232 = pneg %p226
      %p233 = scmp.eq.s32.totalorder %s18, 1
      %p234 = por %p232, %p233
      %p235 = scmp.ne.s32.totalorder %s227, %s230
      %p236 = scmp.eq.s32.totalorder %s18, 0
      %p237 = por %p235, %p236
      %p238 = scmp.ne.s32.totalorder %s227, %s230
      %p239 = scmp.eq.s32.totalorder %s23, 1
      %p240 = por %p238, %p239
      %p241 = scmp.ne.s32.totalorder %s230, %s231
      %p242 = scmp.eq.s32.totalorder %s23, 0
      %p243 = por %p241, %p242
      %p244 = scmp.ne.s32.totalorder %s230, %s231
      %p245 = scmp.eq.s32.totalorder %s24, 1
      %p246 = por %p244, %p245
      %p248 = scmp.ne.s32.totalorder %s231, %s247
      %p249 = scmp.eq.s32.totalorder %s24, 0
      %p250 = por %p248, %p249
      %p251 = scmp.le.s32.totalorder 1, %s18
      %p252 = scmp.lt.s32.totalorder %s18, 3
      %p253 = pnand %p251, %p252
      %p254 = pneg %p253
      // Predicated region
      $region9: #{tpu_custom_call.1} parent=5 // pred_check
        _
      $region10: #{tpu_custom_call.1} parent=5 // pred_check_branch
        %256 = sbr.rel (%p253) target = $region12
      $region11: #{tpu_custom_call.1} parent=5 // pred_region
        %s257 = ssub.s32 %s18, 1
        // Predicated region
        $region13: #{tpu_custom_call.1} parent=11 // pred_check
          %p258 = pneg %p91
        $region14: #{tpu_custom_call.1} parent=11 // pred_check_branch
          %260 = sbr.rel (%p258) target = $region16
        $region15: #{tpu_custom_call.1} parent=11 // pred_region
          _
        $region16: #{tpu_custom_call.1} parent=11 // pred_fallthru
          _
        // Predicated region
        $region17: #{tpu_custom_call.1} parent=11 // pred_check
          %p261 = pneg %p112
        $region18: #{tpu_custom_call.1} parent=11 // pred_check_branch
          %263 = sbr.rel (%p261) target = $region20
        $region19: #{tpu_custom_call.1} parent=11 // pred_region
          _
        $region20: #{tpu_custom_call.1} parent=11 // pred_fallthru
          _
        // Predicated region
        $region21: #{tpu_custom_call.1} parent=11 // pred_check
          %p264 = pneg %p133
        $region22: #{tpu_custom_call.1} parent=11 // pred_check_branch
          %266 = sbr.rel (%p264) target = $region24
        $region23: #{tpu_custom_call.1} parent=11 // pred_region
          _
        $region24: #{tpu_custom_call.1} parent=11 // pred_fallthru
          _
        // Predicated region
        $region25: #{tpu_custom_call.1} parent=11 // pred_check
          %p267 = pneg %p154
        $region26: #{tpu_custom_call.1} parent=11 // pred_check_branch
          %269 = sbr.rel (%p267) target = $region28
        $region27: #{tpu_custom_call.1} parent=11 // pred_region
          _
        $region28: #{tpu_custom_call.1} parent=11 // pred_fallthru
          _
        // Predicated region
        $region29: #{tpu_custom_call.1} parent=11 // pred_check
          %p270 = pneg %p175
        $region30: #{tpu_custom_call.1} parent=11 // pred_check_branch
          %272 = sbr.rel (%p270) target = $region32
        $region31: #{tpu_custom_call.1} parent=11 // pred_region
          _
        $region32: #{tpu_custom_call.1} parent=11 // pred_fallthru
          _
        // Predicated region
        $region33: #{tpu_custom_call.1} parent=11 // pred_check
          %p273 = pneg %p196
        $region34: #{tpu_custom_call.1} parent=11 // pred_check_branch
          %275 = sbr.rel (%p273) target = $region36
        $region35: #{tpu_custom_call.1} parent=11 // pred_region
          _
        $region36: #{tpu_custom_call.1} parent=11 // pred_fallthru
          _
        // Predicated region
        $region37: #{tpu_custom_call.1} parent=11 // pred_check
          %p276 = pneg %p217
        $region38: #{tpu_custom_call.1} parent=11 // pred_check_branch
          %278 = sbr.rel (%p276) target = $region40
        $region39: #{tpu_custom_call.1} parent=11 // pred_region
          _
        $region40: #{tpu_custom_call.1} parent=11 // pred_fallthru
          _
      $region12: #{tpu_custom_call.1} parent=5 // pred_fallthru
        _
      %p279 = scmp.lt.s32.totalorder %s18, 2
      // Predicated region
      $region41: #{tpu_custom_call.1} parent=5 // pred_check
        %p280 = pneg %p279
      $region42: #{tpu_custom_call.1} parent=5 // pred_check_branch
        %282 = sbr.rel (%p280) target = $region44
      $region43: #{tpu_custom_call.1} parent=5 // pred_region
        // Predicated region
        $region45: #{tpu_custom_call.1} parent=43 // pred_check
          %p283 = pneg %p38
        $region46: #{tpu_custom_call.1} parent=43 // pred_check_branch
          %285 = sbr.rel (%p283) target = $region48
        $region47: #{tpu_custom_call.1} parent=43 // pred_region
          %p286 = scmp.lt.s32.totalorder %s18, 1
          %s287 = scalar_select %p286, %s18, 1
          %s288 = smul.addr %s287, 4
          %s289 = scalar_lea.vmem %s0, %s288
        $region48: #{tpu_custom_call.1} parent=43 // pred_fallthru
          _
        // Predicated region
        $region49: #{tpu_custom_call.1} parent=43 // pred_check
          %p290 = pneg %p64
        $region50: #{tpu_custom_call.1} parent=43 // pred_check_branch
          %292 = sbr.rel (%p290) target = $region52
        $region51: #{tpu_custom_call.1} parent=43 // pred_region
          %p293 = scmp.lt.s32.totalorder %s18, 1
          %s294 = scalar_select %p293, %s18, 1
          %s295 = scalar_lea.vmem %s1, %s294
        $region52: #{tpu_custom_call.1} parent=43 // pred_fallthru
          _
      $region44: #{tpu_custom_call.1} parent=5 // pred_fallthru
        _
      %p296 = scmp.le.s32.totalorder 1, %s18
      %p297 = scmp.lt.s32.totalorder %s18, 3
      %p298 = pnand %p296, %p297
      %p299 = pneg %p298
      // Predicated region
      $region53: #{tpu_custom_call.1} parent=5 // pred_check
        _
      $region54: #{tpu_custom_call.1} parent=5 // pred_check_branch
        %301 = sbr.rel (%p298) target = $region56
      $region55: #{tpu_custom_call.1} parent=5 // pred_region
        %s302 = ssub.s32 %s18, 1
        %p303 = scmp.lt.s32.totalorder %s23, 1
        %s304 = scalar_select %p303, %s23, 1
        %s305 = smul.addr %s304, 4
        %s306 = scalar_lea.vmem %s0, %s305
        %p307 = pneg %p44
        %p308 = pneg %p41
        %p309 = scmp.lt.s32.totalorder %s23, 1
        %s310 = scalar_select %p309, %s23, 1
        %s311 = scalar_lea.vmem %s1, %s310
        %p312 = pneg %p70
        %p313 = pneg %p67
        %p314 = pneg %p91
        %p315 = pneg %p88
        %p316 = pneg %p112
        %p317 = pneg %p109
        %p318 = pneg %p133
        %p319 = pneg %p130
        %p320 = pneg %p154
        %p321 = pneg %p151
        %p322 = pneg %p175
        %p323 = pneg %p172
        %p324 = pneg %p196
        %p325 = pneg %p193
        %p326 = pneg %p217
        %p327 = pneg %p214
        %p328 = pneg %p243
        %p329 = pneg %p240
        %s330 = sand.u32 %s230, 1
        %s331 = scalar_lea.sflag [#allocation3], %s330
        %s332 = sand.u32 %s230, 1
        %s333 = smul.addr %s332, 4
        %s334 = scalar_lea.vmem [#allocation2], %s333
        %p335 = scmp.lt.s32.totalorder %s23, 1
        %s336 = scalar_select %p335, %s23, 1
        %s337 = smul.addr %s336, 4
        %s338 = scalar_lea.vmem %s0, %s337
        %p339 = scmp.lt.s32.totalorder %s23, 1
        %s340 = scalar_select %p339, %s23, 1
        %s341 = scalar_lea.vmem %s1, %s340
        %v342 = vld [vmem:[%s338] sm:$0xf]
        %v343 = vld [vmem:[%s341] sm:$0x1]
        %v345 = vlaneseq
        %v346 = vshrl.u32 %v345, 7
        %v347 = vsub.s32 0, %v346
        %v348 = vrot.slane %v343, %v347
        %v350 = vmul.f32 %v342, %v348
        %v351 = vld [vmem:[%s2] sm:$0xff]
        %v352 = vld [vmem:[%s2 + $0x8] sm:$0xff]
        %v353 = vld [vmem:[%s2 + $0x10] sm:$0xff]
        %v354 = vld [vmem:[%s2 + $0x18] sm:$0xff]
        %v355 = vld [vmem:[%s2 + $0x20] sm:$0xff]
        %v356 = vld [vmem:[%s2 + $0x28] sm:$0xff]
        %v357 = vld [vmem:[%s2 + $0x30] sm:$0xff]
        %v358 = vld [vmem:[%s2 + $0x38] sm:$0xff]
        %v359 = vld [vmem:[%s2 + $0x40] sm:$0xff]
        %v360 = vld [vmem:[%s2 + $0x48] sm:$0xff]
        %v361 = vld [vmem:[%s2 + $0x50] sm:$0xff]
        %v362 = vld [vmem:[%s2 + $0x58] sm:$0xff]
        %vm363 = vcmask 31744
        %v365 = vsel %vm363, %v351, 0
        %v368 = vsel %vm363, %v352, 0
        %v371 = vsel %vm363, %v353, 0
        %v374 = vsel %vm363, %v354, 0
        %v377 = vsel %vm363, %v355, 0
        %v380 = vsel %vm363, %v356, 0
        %v383 = vsel %vm363, %v357, 0
        %v386 = vsel %vm363, %v358, 0
        %v389 = vsel %vm363, %v359, 0
        %v392 = vsel %vm363, %v360, 0
        %v395 = vsel %vm363, %v361, 0
        %v398 = vsel %vm363, %v362, 0
        %vm400 = vcmask 1043456
        %v402 = vsel %vm400, %v350, 0
        %404 = vmatprep.subr.mxu0 0.0
        %405 = vmatpush1.msra.mxu0 %v402
        %406 = vmatprep.subr.mxu0 0.0
        %407 = vmatpush1.msra.mxu0 0.0
        %408 = vmatprep.subr.mxu0 0.0
        %409 = vmatpush1.msra.mxu0 0.0
        %410 = vmatprep.subr.mxu0 0.0
        %411 = vmatpush1.msra.mxu0 0.0
        %412 = vmatprep.subr.mxu0 0.0
        %413 = vmatpush1.msra.mxu0 0.0
        %414 = vmatprep.subr.mxu0 0.0
        %415 = vmatpush1.msra.mxu0 0.0
        %416 = vmatprep.subr.mxu0 0.0
        %417 = vmatpush1.msra.mxu0 0.0
        %418 = vmatprep.subr.mxu0 0.0
        %419 = vmatpush1.msra.mxu0 0.0
        %420 = vmatprep.subr.mxu0 0.0
        %421 = vmatpush1.msra.mxu0 0.0
        %422 = vmatprep.subr.mxu0 0.0
        %423 = vmatpush1.msra.mxu0 0.0
        %424 = vmatprep.subr.mxu0 0.0
        %425 = vmatpush1.msra.mxu0 0.0
        %426 = vmatprep.subr.mxu0 0.0
        %427 = vmatpush1.msra.mxu0 0.0
        %428 = vmatprep.subr.mxu0 0.0
        %429 = vmatpush1.msra.mxu0 0.0
        %430 = vmatprep.subr.mxu0 0.0
        %431 = vmatpush1.msra.mxu0 0.0
        %432 = vmatprep.subr.mxu0 0.0
        %433 = vmatpush1.msra.mxu0 0.0
        %434 = vmatprep.subr.mxu0 0.0
        %435 = vmatpush1.msra.mxu0 0.0
        %436 = vmatprep.subr.mxu0 0.0
        %437 = vmatpush1.msra.mxu0 0.0
        %438 = vmatprep.subr.mxu0 0.0
        %439 = vmatpush1.msra.mxu0 0.0
        %440 = vmatprep.subr.mxu0 0.0
        %441 = vmatpush1.msra.mxu0 0.0
        %442 = vmatprep.subr.mxu0 0.0
        %443 = vmatpush1.msra.mxu0 0.0
        %444 = vmatprep.subr.mxu0 0.0
        %445 = vmatpush1.msra.mxu0 0.0
        %446 = vmatprep.subr.mxu0 0.0
        %447 = vmatpush1.msra.mxu0 0.0
        %448 = vmatprep.subr.mxu0 0.0
        %449 = vmatpush1.msra.mxu0 0.0
        %450 = vmatprep.subr.mxu0 0.0
        %451 = vmatpush1.msra.mxu0 0.0
        %452 = vmatprep.subr.mxu0 0.0
        %453 = vmatpush1.msra.mxu0 0.0
        %454 = vmatprep.subr.mxu0 0.0
        %455 = vmatpush1.msra.mxu0 0.0
        %456 = vmatprep.subr.mxu0 0.0
        %457 = vmatpush1.msra.mxu0 0.0
        %458 = vmatprep.subr.mxu0 0.0
        %459 = vmatpush1.msra.mxu0 0.0
        %460 = vmatprep.subr.mxu0 0.0
        %461 = vmatpush1.msra.mxu0 0.0
        %462 = vmatprep.subr.mxu0 0.0
        %463 = vmatpush1.msra.mxu0 0.0
        %464 = vmatprep.subr.mxu0 0.0
        %465 = vmatpush1.msra.mxu0 0.0
        %466 = vmatprep.subr.mxu0 0.0
        %467 = vmatpush1.msra.mxu0 0.0
        %468 = vmatprep.mubr.f32.mxu0 0.0
        %469 = vmatmul.mubr.f32.gmra.mrb[0].mxu0 %v365
        %v470 = vpop.f32.mrb[0].mxu0
        %v471 = vadd.f32 0.0, %v470
        %v472 = vpop.f32.mrb[0].mxu0
        %473 = vmatprep.mubr.f32.mxu0 0.0
        %474 = vmatmul.mubr.f32.gmra.mrb[0].mxu0 %v368
        %v475 = vpop.f32.mrb[0].mxu0
        %v476 = vadd.f32 0.0, %v475
        %v477 = vpop.f32.mrb[0].mxu0
        %478 = vmatprep.mubr.f32.mxu0 0.0
        %479 = vmatmul.mubr.f32.gmra.mrb[0].mxu0 %v371
        %v480 = vpop.f32.mrb[0].mxu0
        %v481 = vadd.f32 0.0, %v480
        %v482 = vpop.f32.mrb[0].mxu0
        %483 = vmatprep.mubr.f32.mxu0 0.0
        %484 = vmatmul.mubr.f32.gmra.mrb[0].mxu0 %v374
        %v485 = vpop.f32.mrb[0].mxu0
        %v486 = vadd.f32 0.0, %v485
        %v487 = vpop.f32.mrb[0].mxu0
        %488 = vmatprep.mubr.f32.mxu0 0.0
        %489 = vmatmul.mubr.f32.gmra.mrb[0].mxu0 %v377
        %v490 = vpop.f32.mrb[0].mxu0
        %v491 = vadd.f32 0.0, %v490
        %v492 = vpop.f32.mrb[0].mxu0
        %493 = vmatprep.mubr.f32.mxu0 0.0
        %494 = vmatmul.mubr.f32.gmra.mrb[0].mxu0 %v380
        %v495 = vpop.f32.mrb[0].mxu0
        %v496 = vadd.f32 0.0, %v495
        %v497 = vpop.f32.mrb[0].mxu0
        %498 = vmatprep.mubr.f32.mxu0 0.0
        %499 = vmatmul.mubr.f32.gmra.mrb[0].mxu0 %v383
        %v500 = vpop.f32.mrb[0].mxu0
        %v501 = vadd.f32 0.0, %v500
        %v502 = vpop.f32.mrb[0].mxu0
        %503 = vmatprep.mubr.f32.mxu0 0.0
        %504 = vmatmul.mubr.f32.gmra.mrb[0].mxu0 %v386
        %v505 = vpop.f32.mrb[0].mxu0
        %v506 = vadd.f32 0.0, %v505
        %v507 = vpop.f32.mrb[0].mxu0
        %508 = vmatprep.mubr.f32.mxu0 0.0
        %509 = vmatmul.mubr.f32.gmra.mrb[0].mxu0 %v389
        %v510 = vpop.f32.mrb[0].mxu0
        %v511 = vadd.f32 0.0, %v510
        %v512 = vpop.f32.mrb[0].mxu0
        %513 = vmatprep.mubr.f32.mxu0 0.0
        %514 = vmatmul.mubr.f32.gmra.mrb[0].mxu0 %v392
        %v515 = vpop.f32.mrb[0].mxu0
        %v516 = vadd.f32 0.0, %v515
        %v517 = vpop.f32.mrb[0].mxu0
        %518 = vmatprep.mubr.f32.mxu0 0.0
        %519 = vmatmul.mubr.f32.gmra.mrb[0].mxu0 %v395
        %v520 = vpop.f32.mrb[0].mxu0
        %v521 = vadd.f32 0.0, %v520
        %v522 = vpop.f32.mrb[0].mxu0
        %523 = vmatprep.mubr.f32.mxu0 0.0
        %524 = vmatmul.mubr.f32.gmra.mrb[0].mxu0 %v398
        %v525 = vpop.f32.mrb[0].mxu0
        %v526 = vadd.f32 0.0, %v525
        %v527 = vpop.f32.mrb[0].mxu0
        %528 = vdwg.mxu0
        %v529 = vld [vmem:[%s4] sm:$0xff]
        %v530 = vld [vmem:[%s4 + $0x8] sm:$0xff]
        %v531 = vld [vmem:[%s4 + $0x10] sm:$0xff]
        %v532 = vld [vmem:[%s4 + $0x18] sm:$0xff]
        %534 = vset.pattern.permute.xlu0 0
        %535 = vperm.xlu0 %534, %v529
        %v536 = vpop.permute.xlu0 %535
        %539 = vset.pattern.permute.xlu0 0
        %540 = vperm.xlu0 %539, %v530
        %v541 = vpop.permute.xlu0 %540
        %544 = vset.pattern.permute.xlu0 0
        %545 = vperm.xlu0 %544, %v531
        %v546 = vpop.permute.xlu0 %545
        %549 = vset.pattern.permute.xlu0 0
        %550 = vperm.xlu0 %549, %v532
        %v551 = vpop.permute.xlu0 %550
        %v553 = vadd.f32 %v471, %v536
        %v554 = vadd.f32 %v476, %v541
        %v555 = vadd.f32 %v481, %v546
        %v556 = vadd.f32 %v486, %v551
        %561 = vrot.lane.b32.xlu0 %v491, 127
        %v562 = vpop.permute.xlu0 %561
        %563 = vrot.lane.b32.xlu0 %v496, 127
        %v564 = vpop.permute.xlu0 %563
        %565 = vrot.lane.b32.xlu0 %v501, 127
        %v566 = vpop.permute.xlu0 %565
        %567 = vrot.lane.b32.xlu0 %v506, 127
        %v568 = vpop.permute.xlu0 %567
        %v573 = vadd.f32 %v553, %v562
        %v574 = vadd.f32 %v554, %v564
        %v575 = vadd.f32 %v555, %v566
        %v576 = vadd.f32 %v556, %v568
        %581 = vrot.lane.b32.xlu0 %v511, 126
        %v582 = vpop.permute.xlu0 %581
        %583 = vrot.lane.b32.xlu0 %v516, 126
        %v584 = vpop.permute.xlu0 %583
        %585 = vrot.lane.b32.xlu0 %v521, 126
        %v586 = vpop.permute.xlu0 %585
        %587 = vrot.lane.b32.xlu0 %v526, 126
        %v588 = vpop.permute.xlu0 %587
        %v593 = vadd.f32 %v573, %v582
        %v594 = vadd.f32 %v574, %v584
        %v595 = vadd.f32 %v575, %v586
        %v596 = vadd.f32 %v576, %v588
        %vm597 = vcmask 162816
        %v598 = vsel %vm597, %v593, 0.0
        %v599 = vsel %vm597, %v594, 0.0
        %v600 = vadd.f32 %v598, %v599
        %v601 = vsel %vm597, %v595, 0.0
        %v602 = vadd.f32 %v600, %v601
        %v603 = vsel %vm597, %v596, 0.0
        %v604 = vadd.f32 %v602, %v603
        %v605 = vrot.slane %v604, 4
        %v606 = vadd.f32 %v604, %v605
        %v607 = vrot.slane %v606, 2
        %v608 = vadd.f32 %v606, %v607
        %v609 = vrot.slane %v608, 1
        %v610 = vadd.f32 %v608, %v609
        %v611 = vrcp.pop 32.0
        %v612 = vmul.f32 %v610, %v611
        %v613 = vsub.f32 %v593, %v612
        %v614 = vsub.f32 %v594, %v612
        %v615 = vsub.f32 %v595, %v612
        %v616 = vsub.f32 %v596, %v612
        %v617 = vmul.f32 %v613, %v613
        %v618 = vmul.f32 %v614, %v614
        %v619 = vmul.f32 %v615, %v615
        %v620 = vmul.f32 %v616, %v616
        %v621 = vsel %vm597, %v617, 0.0
        %v622 = vsel %vm597, %v618, 0.0
        %v623 = vadd.f32 %v621, %v622
        %v624 = vsel %vm597, %v619, 0.0
        %v625 = vadd.f32 %v623, %v624
        %v626 = vsel %vm597, %v620, 0.0
        %v627 = vadd.f32 %v625, %v626
        %v628 = vrot.slane %v627, 4
        %v629 = vadd.f32 %v627, %v628
        %v630 = vrot.slane %v629, 2
        %v631 = vadd.f32 %v629, %v630
        %v632 = vrot.slane %v631, 1
        %v633 = vadd.f32 %v631, %v632
        %v634 = vmul.f32 %v633, %v611
        %v635 = vadd.f32 %v634, 1e-05
        %v636 = vrsqrt.pop %v635
        %v637 = vmul.f32 %v613, %v636
        %v638 = vmul.f32 %v614, %v636
        %v639 = vmul.f32 %v615, %v636
        %v640 = vmul.f32 %v616, %v636
        %v641 = vld [vmem:[%s5] sm:$0xff]
        %v642 = vld [vmem:[%s5 + $0x8] sm:$0xff]
        %v643 = vld [vmem:[%s5 + $0x10] sm:$0xff]
        %v644 = vld [vmem:[%s5 + $0x18] sm:$0xff]
        %646 = vset.pattern.permute.xlu0 0
        %647 = vperm.xlu0 %646, %v641
        %v648 = vpop.permute.xlu0 %647
        %651 = vset.pattern.permute.xlu0 0
        %652 = vperm.xlu0 %651, %v642
        %v653 = vpop.permute.xlu0 %652
        %656 = vset.pattern.permute.xlu0 0
        %657 = vperm.xlu0 %656, %v643
        %v658 = vpop.permute.xlu0 %657
        %661 = vset.pattern.permute.xlu0 0
        %662 = vperm.xlu0 %661, %v644
        %v663 = vpop.permute.xlu0 %662
        %v665 = vmul.f32 %v637, %v648
        %v666 = vmul.f32 %v638, %v653
        %v667 = vmul.f32 %v639, %v658
        %v668 = vmul.f32 %v640, %v663
        %v669 = vld [vmem:[%s6] sm:$0xff]
        %v670 = vld [vmem:[%s6 + $0x8] sm:$0xff]
        %v671 = vld [vmem:[%s6 + $0x10] sm:$0xff]
        %v672 = vld [vmem:[%s6 + $0x18] sm:$0xff]
        %674 = vset.pattern.permute.xlu0 0
        %675 = vperm.xlu0 %674, %v669
        %v676 = vpop.permute.xlu0 %675
        %679 = vset.pattern.permute.xlu0 0
        %680 = vperm.xlu0 %679, %v670
        %v681 = vpop.permute.xlu0 %680
        %684 = vset.pattern.permute.xlu0 0
        %685 = vperm.xlu0 %684, %v671
        %v686 = vpop.permute.xlu0 %685
        %689 = vset.pattern.permute.xlu0 0
        %690 = vperm.xlu0 %689, %v672
        %v691 = vpop.permute.xlu0 %690
        %v693 = vadd.f32 %v665, %v676
        %v694 = vadd.f32 %v666, %v681
        %v695 = vadd.f32 %v667, %v686
        %v696 = vadd.f32 %v668, %v691
        %v697 = vmax.f32 %v693, 0.0
        %v698 = vmax.f32 %v694, 0.0
        %v699 = vmax.f32 %v695, 0.0
        %v700 = vmax.f32 %v696, 0.0
        %701 = vrot.lane.b32.xlu0 %v348, 127
        %v702 = vpop.permute.xlu0 %701
        %v704 = vmul.f32 %v697, %v702
        %v705 = vmul.f32 %v698, %v702
        %v706 = vmul.f32 %v699, %v702
        %v707 = vmul.f32 %v700, %v702
        %v708 = vld [vmem:[%s3] sm:$0xff]
        %v709 = vld [vmem:[%s3 + $0x8] sm:$0xff]
        %v710 = vld [vmem:[%s3 + $0x10] sm:$0xff]
        %v711 = vld [vmem:[%s3 + $0x18] sm:$0xff]
        %v712 = vld [vmem:[%s3 + $0x20] sm:$0xff]
        %v713 = vld [vmem:[%s3 + $0x28] sm:$0xff]
        %v714 = vld [vmem:[%s3 + $0x30] sm:$0xff]
        %v715 = vld [vmem:[%s3 + $0x38] sm:$0xff]
        %v716 = vld [vmem:[%s3 + $0x40] sm:$0xff]
        %v717 = vld [vmem:[%s3 + $0x48] sm:$0xff]
        %v718 = vld [vmem:[%s3 + $0x50] sm:$0xff]
        %v719 = vld [vmem:[%s3 + $0x58] sm:$0xff]
        %vm720 = vcmask 261120
        %v722 = vsel %vm720, %v708, 0
        %v725 = vsel %vm720, %v709, 0
        %v728 = vsel %vm720, %v710, 0
        %v731 = vsel %vm720, %v711, 0
        %v734 = vsel %vm720, %v712, 0
        %v737 = vsel %vm720, %v713, 0
        %v740 = vsel %vm720, %v714, 0
        %v743 = vsel %vm720, %v715, 0
        %v746 = vsel %vm720, %v716, 0
        %v749 = vsel %vm720, %v717, 0
        %v752 = vsel %vm720, %v718, 0
        %v755 = vsel %vm720, %v719, 0
        %757 = vmatprep.subr.mxu0 0.0
        %758 = vmatpush1.msra.mxu0 %v704
        %759 = vmatprep.subr.mxu0 0.0
        %760 = vmatpush1.msra.mxu0 %v705
        %761 = vmatprep.subr.mxu0 0.0
        %762 = vmatpush1.msra.mxu0 %v706
        %763 = vmatprep.subr.mxu0 0.0
        %764 = vmatpush1.msra.mxu0 %v707
        %765 = vmatprep.subr.mxu0 0.0
        %766 = vmatpush1.msra.mxu0 0.0
        %767 = vmatprep.subr.mxu0 0.0
        %768 = vmatpush1.msra.mxu0 0.0
        %769 = vmatprep.subr.mxu0 0.0
        %770 = vmatpush1.msra.mxu0 0.0
        %771 = vmatprep.subr.mxu0 0.0
        %772 = vmatpush1.msra.mxu0 0.0
        %773 = vmatprep.subr.mxu0 0.0
        %774 = vmatpush1.msra.mxu0 0.0
        %775 = vmatprep.subr.mxu0 0.0
        %776 = vmatpush1.msra.mxu0 0.0
        %777 = vmatprep.subr.mxu0 0.0
        %778 = vmatpush1.msra.mxu0 0.0
        %779 = vmatprep.subr.mxu0 0.0
        %780 = vmatpush1.msra.mxu0 0.0
        %781 = vmatprep.subr.mxu0 0.0
        %782 = vmatpush1.msra.mxu0 0.0
        %783 = vmatprep.subr.mxu0 0.0
        %784 = vmatpush1.msra.mxu0 0.0
        %785 = vmatprep.subr.mxu0 0.0
        %786 = vmatpush1.msra.mxu0 0.0
        %787 = vmatprep.subr.mxu0 0.0
        %788 = vmatpush1.msra.mxu0 0.0
        %789 = vmatprep.subr.mxu0 0.0
        %790 = vmatpush1.msra.mxu0 0.0
        %791 = vmatprep.subr.mxu0 0.0
        %792 = vmatpush1.msra.mxu0 0.0
        %793 = vmatprep.subr.mxu0 0.0
        %794 = vmatpush1.msra.mxu0 0.0
        %795 = vmatprep.subr.mxu0 0.0
        %796 = vmatpush1.msra.mxu0 0.0
        %797 = vmatprep.subr.mxu0 0.0
        %798 = vmatpush1.msra.mxu0 0.0
        %799 = vmatprep.subr.mxu0 0.0
        %800 = vmatpush1.msra.mxu0 0.0
        %801 = vmatprep.subr.mxu0 0.0
        %802 = vmatpush1.msra.mxu0 0.0
        %803 = vmatprep.subr.mxu0 0.0
        %804 = vmatpush1.msra.mxu0 0.0
        %805 = vmatprep.subr.mxu0 0.0
        %806 = vmatpush1.msra.mxu0 0.0
        %807 = vmatprep.subr.mxu0 0.0
        %808 = vmatpush1.msra.mxu0 0.0
        %809 = vmatprep.subr.mxu0 0.0
        %810 = vmatpush1.msra.mxu0 0.0
        %811 = vmatprep.subr.mxu0 0.0
        %812 = vmatpush1.msra.mxu0 0.0
        %813 = vmatprep.subr.mxu0 0.0
        %814 = vmatpush1.msra.mxu0 0.0
        %815 = vmatprep.subr.mxu0 0.0
        %816 = vmatpush1.msra.mxu0 0.0
        %817 = vmatprep.subr.mxu0 0.0
        %818 = vmatpush1.msra.mxu0 0.0
        %819 = vmatprep.subr.mxu0 0.0
        %820 = vmatpush1.msra.mxu0 0.0
        %821 = vmatprep.mubr.f32.mxu0 0.0
        %822 = vmatmul.mubr.f32.gmra.mrb[0].mxu0 %v722
        %v823 = vpop.f32.mrb[0].mxu0
        %v824 = vadd.f32 0.0, %v823
        %v825 = vpop.f32.mrb[0].mxu0
        %826 = vmatprep.mubr.f32.mxu0 0.0
        %827 = vmatmul.mubr.f32.gmra.mrb[0].mxu0 %v725
        %v828 = vpop.f32.mrb[0].mxu0
        %v829 = vadd.f32 0.0, %v828
        %v830 = vpop.f32.mrb[0].mxu0
        %831 = vmatprep.mubr.f32.mxu0 0.0
        %832 = vmatmul.mubr.f32.gmra.mrb[0].mxu0 %v728
        %v833 = vpop.f32.mrb[0].mxu0
        %v834 = vadd.f32 0.0, %v833
        %v835 = vpop.f32.mrb[0].mxu0
        %836 = vmatprep.mubr.f32.mxu0 0.0
        %837 = vmatmul.mubr.f32.gmra.mrb[0].mxu0 %v731
        %v838 = vpop.f32.mrb[0].mxu0
        %v839 = vadd.f32 0.0, %v838
        %v840 = vpop.f32.mrb[0].mxu0
        %841 = vmatprep.mubr.f32.mxu0 0.0
        %842 = vmatmul.mubr.f32.gmra.mrb[0].mxu0 %v734
        %v843 = vpop.f32.mrb[0].mxu0
        %v844 = vadd.f32 0.0, %v843
        %v845 = vpop.f32.mrb[0].mxu0
        %846 = vmatprep.mubr.f32.mxu0 0.0
        %847 = vmatmul.mubr.f32.gmra.mrb[0].mxu0 %v737
        %v848 = vpop.f32.mrb[0].mxu0
        %v849 = vadd.f32 0.0, %v848
        %v850 = vpop.f32.mrb[0].mxu0
        %851 = vmatprep.mubr.f32.mxu0 0.0
        %852 = vmatmul.mubr.f32.gmra.mrb[0].mxu0 %v740
        %v853 = vpop.f32.mrb[0].mxu0
        %v854 = vadd.f32 0.0, %v853
        %v855 = vpop.f32.mrb[0].mxu0
        %856 = vmatprep.mubr.f32.mxu0 0.0
        %857 = vmatmul.mubr.f32.gmra.mrb[0].mxu0 %v743
        %v858 = vpop.f32.mrb[0].mxu0
        %v859 = vadd.f32 0.0, %v858
        %v860 = vpop.f32.mrb[0].mxu0
        %861 = vmatprep.mubr.f32.mxu0 0.0
        %862 = vmatmul.mubr.f32.gmra.mrb[0].mxu0 %v746
        %v863 = vpop.f32.mrb[0].mxu0
        %v864 = vadd.f32 0.0, %v863
        %v865 = vpop.f32.mrb[0].mxu0
        %866 = vmatprep.mubr.f32.mxu0 0.0
        %867 = vmatmul.mubr.f32.gmra.mrb[0].mxu0 %v749
        %v868 = vpop.f32.mrb[0].mxu0
        %v869 = vadd.f32 0.0, %v868
        %v870 = vpop.f32.mrb[0].mxu0
        %871 = vmatprep.mubr.f32.mxu0 0.0
        %872 = vmatmul.mubr.f32.gmra.mrb[0].mxu0 %v752
        %v873 = vpop.f32.mrb[0].mxu0
        %v874 = vadd.f32 0.0, %v873
        %v875 = vpop.f32.mrb[0].mxu0
        %876 = vmatprep.mubr.f32.mxu0 0.0
        %877 = vmatmul.mubr.f32.gmra.mrb[0].mxu0 %v755
        %v878 = vpop.f32.mrb[0].mxu0
        %v879 = vadd.f32 0.0, %v878
        %v880 = vpop.f32.mrb[0].mxu0
        %881 = vdwg.mxu0
        %s882 = scalar_lea.vmem %s4, 32
        %v883 = vld [vmem:[%s882] sm:$0xff]
        %v884 = vld [vmem:[%s882 + $0x8] sm:$0xff]
        %v885 = vld [vmem:[%s882 + $0x10] sm:$0xff]
        %v886 = vld [vmem:[%s882 + $0x18] sm:$0xff]
        %888 = vset.pattern.permute.xlu0 0
        %889 = vperm.xlu0 %888, %v883
        %v890 = vpop.permute.xlu0 %889
        %893 = vset.pattern.permute.xlu0 0
        %894 = vperm.xlu0 %893, %v884
        %v895 = vpop.permute.xlu0 %894
        %898 = vset.pattern.permute.xlu0 0
        %899 = vperm.xlu0 %898, %v885
        %v900 = vpop.permute.xlu0 %899
        %903 = vset.pattern.permute.xlu0 0
        %904 = vperm.xlu0 %903, %v886
        %v905 = vpop.permute.xlu0 %904
        %v907 = vadd.f32 %v824, %v890
        %v908 = vadd.f32 %v829, %v895
        %v909 = vadd.f32 %v834, %v900
        %v910 = vadd.f32 %v839, %v905
        %915 = vrot.lane.b32.xlu0 %v844, 127
        %v916 = vpop.permute.xlu0 %915
        %917 = vrot.lane.b32.xlu0 %v849, 127
        %v918 = vpop.permute.xlu0 %917
        %919 = vrot.lane.b32.xlu0 %v854, 127
        %v920 = vpop.permute.xlu0 %919
        %921 = vrot.lane.b32.xlu0 %v859, 127
        %v922 = vpop.permute.xlu0 %921
        %v927 = vadd.f32 %v907, %v916
        %v928 = vadd.f32 %v908, %v918
        %v929 = vadd.f32 %v909, %v920
        %v930 = vadd.f32 %v910, %v922
        %935 = vrot.lane.b32.xlu0 %v864, 126
        %v936 = vpop.permute.xlu0 %935
        %937 = vrot.lane.b32.xlu0 %v869, 126
        %v938 = vpop.permute.xlu0 %937
        %939 = vrot.lane.b32.xlu0 %v874, 126
        %v940 = vpop.permute.xlu0 %939
        %941 = vrot.lane.b32.xlu0 %v879, 126
        %v942 = vpop.permute.xlu0 %941
        %v947 = vadd.f32 %v927, %v936
        %v948 = vadd.f32 %v928, %v938
        %v949 = vadd.f32 %v929, %v940
        %v950 = vadd.f32 %v930, %v942
        %vm951 = vcmask 146432
        %v952 = vsel %vm951, %v947, 0.0
        %v953 = vsel %vm951, %v948, 0.0
        %v954 = vadd.f32 %v952, %v953
        %v955 = vsel %vm951, %v949, 0.0
        %v956 = vadd.f32 %v954, %v955
        %v957 = vsel %vm951, %v950, 0.0
        %v958 = vadd.f32 %v956, %v957
        %v959 = vrot.slane %v958, 4
        %v960 = vadd.f32 %v958, %v959
        %v961 = vrot.slane %v960, 2
        %v962 = vadd.f32 %v960, %v961
        %v963 = vrot.slane %v962, 1
        %v964 = vadd.f32 %v962, %v963
        %v965 = vmul.f32 %v964, %v611
        %v966 = vsub.f32 %v947, %v965
        %v967 = vsub.f32 %v948, %v965
        %v968 = vsub.f32 %v949, %v965
        %v969 = vsub.f32 %v950, %v965
        %v970 = vmul.f32 %v966, %v966
        %v971 = vmul.f32 %v967, %v967
        %v972 = vmul.f32 %v968, %v968
        %v973 = vmul.f32 %v969, %v969
        %v974 = vsel %vm951, %v970, 0.0
        %v975 = vsel %vm951, %v971, 0.0
        %v976 = vadd.f32 %v974, %v975
        %v977 = vsel %vm951, %v972, 0.0
        %v978 = vadd.f32 %v976, %v977
        %v979 = vsel %vm951, %v973, 0.0
        %v980 = vadd.f32 %v978, %v979
        %v981 = vrot.slane %v980, 4
        %v982 = vadd.f32 %v980, %v981
        %v983 = vrot.slane %v982, 2
        %v984 = vadd.f32 %v982, %v983
        %v985 = vrot.slane %v984, 1
        %v986 = vadd.f32 %v984, %v985
        %v987 = vmul.f32 %v986, %v611
        %v988 = vadd.f32 %v987, 1e-05
        %v989 = vrsqrt.pop %v988
        %v990 = vmul.f32 %v966, %v989
        %v991 = vmul.f32 %v967, %v989
        %v992 = vmul.f32 %v968, %v989
        %v993 = vmul.f32 %v969, %v989
        %s994 = scalar_lea.vmem %s5, 32
        %v995 = vld [vmem:[%s994] sm:$0xff]
        %v996 = vld [vmem:[%s994 + $0x8] sm:$0xff]
        %v997 = vld [vmem:[%s994 + $0x10] sm:$0xff]
        %v998 = vld [vmem:[%s994 + $0x18] sm:$0xff]
        %1000 = vset.pattern.permute.xlu0 0
        %1001 = vperm.xlu0 %1000, %v995
        %v1002 = vpop.permute.xlu0 %1001
        %1005 = vset.pattern.permute.xlu0 0
        %1006 = vperm.xlu0 %1005, %v996
        %v1007 = vpop.permute.xlu0 %1006
        %1010 = vset.pattern.permute.xlu0 0
        %1011 = vperm.xlu0 %1010, %v997
        %v1012 = vpop.permute.xlu0 %1011
        %1015 = vset.pattern.permute.xlu0 0
        %1016 = vperm.xlu0 %1015, %v998
        %v1017 = vpop.permute.xlu0 %1016
        %v1019 = vmul.f32 %v990, %v1002
        %v1020 = vmul.f32 %v991, %v1007
        %v1021 = vmul.f32 %v992, %v1012
        %v1022 = vmul.f32 %v993, %v1017
        %s1023 = scalar_lea.vmem %s6, 32
        %v1024 = vld [vmem:[%s1023] sm:$0xff]
        %v1025 = vld [vmem:[%s1023 + $0x8] sm:$0xff]
        %v1026 = vld [vmem:[%s1023 + $0x10] sm:$0xff]
        %v1027 = vld [vmem:[%s1023 + $0x18] sm:$0xff]
        %1029 = vset.pattern.permute.xlu0 0
        %1030 = vperm.xlu0 %1029, %v1024
        %v1031 = vpop.permute.xlu0 %1030
        %1034 = vset.pattern.permute.xlu0 0
        %1035 = vperm.xlu0 %1034, %v1025
        %v1036 = vpop.permute.xlu0 %1035
        %1039 = vset.pattern.permute.xlu0 0
        %1040 = vperm.xlu0 %1039, %v1026
        %v1041 = vpop.permute.xlu0 %1040
        %1044 = vset.pattern.permute.xlu0 0
        %1045 = vperm.xlu0 %1044, %v1027
        %v1046 = vpop.permute.xlu0 %1045
        %v1048 = vadd.f32 %v1019, %v1031
        %v1049 = vadd.f32 %v1020, %v1036
        %v1050 = vadd.f32 %v1021, %v1041
        %v1051 = vadd.f32 %v1022, %v1046
        %v1052 = vmax.f32 %v1048, 0.0
        %v1053 = vmax.f32 %v1049, 0.0
        %v1054 = vmax.f32 %v1050, 0.0
        %v1055 = vmax.f32 %v1051, 0.0
        %1056 = vrot.lane.b32.xlu0 %v348, 126
        %v1057 = vpop.permute.xlu0 %1056
        %v1059 = vmul.f32 %v1052, %v1057
        %v1060 = vmul.f32 %v1053, %v1057
        %v1061 = vmul.f32 %v1054, %v1057
        %v1062 = vmul.f32 %v1055, %v1057
        %s1063 = scalar_lea.vmem %s3, 96
        %v1064 = vld [vmem:[%s1063] sm:$0xff]
        %v1065 = vld [vmem:[%s1063 + $0x8] sm:$0xff]
        %v1066 = vld [vmem:[%s1063 + $0x10] sm:$0xff]
        %v1067 = vld [vmem:[%s1063 + $0x18] sm:$0xff]
        %v1068 = vld [vmem:[%s1063 + $0x20] sm:$0xff]
        %v1069 = vld [vmem:[%s1063 + $0x28] sm:$0xff]
        %v1070 = vld [vmem:[%s1063 + $0x30] sm:$0xff]
        %v1071 = vld [vmem:[%s1063 + $0x38] sm:$0xff]
        %v1072 = vld [vmem:[%s1063 + $0x40] sm:$0xff]
        %v1073 = vld [vmem:[%s1063 + $0x48] sm:$0xff]
        %v1074 = vld [vmem:[%s1063 + $0x50] sm:$0xff]
        %v1075 = vld [vmem:[%s1063 + $0x58] sm:$0xff]
        %v1077 = vsel %vm720, %v1064, 0
        %v1080 = vsel %vm720, %v1065, 0
        %v1083 = vsel %vm720, %v1066, 0
        %v1086 = vsel %vm720, %v1067, 0
        %v1089 = vsel %vm720, %v1068, 0
        %v1092 = vsel %vm720, %v1069, 0
        %v1095 = vsel %vm720, %v1070, 0
        %v1098 = vsel %vm720, %v1071, 0
        %v1101 = vsel %vm720, %v1072, 0
        %v1104 = vsel %vm720, %v1073, 0
        %v1107 = vsel %vm720, %v1074, 0
        %v1110 = vsel %vm720, %v1075, 0
        %1112 = vmatprep.subr.mxu0 0.0
        %1113 = vmatpush1.msra.mxu0 %v1059
        %1114 = vmatprep.subr.mxu0 0.0
        %1115 = vmatpush1.msra.mxu0 %v1060
        %1116 = vmatprep.subr.mxu0 0.0
        %1117 = vmatpush1.msra.mxu0 %v1061
        %1118 = vmatprep.subr.mxu0 0.0
        %1119 = vmatpush1.msra.mxu0 %v1062
        %1120 = vmatprep.subr.mxu0 0.0
        %1121 = vmatpush1.msra.mxu0 0.0
        %1122 = vmatprep.subr.mxu0 0.0
        %1123 = vmatpush1.msra.mxu0 0.0
        %1124 = vmatprep.subr.mxu0 0.0
        %1125 = vmatpush1.msra.mxu0 0.0
        %1126 = vmatprep.subr.mxu0 0.0
        %1127 = vmatpush1.msra.mxu0 0.0
        %1128 = vmatprep.subr.mxu0 0.0
        %1129 = vmatpush1.msra.mxu0 0.0
        %1130 = vmatprep.subr.mxu0 0.0
        %1131 = vmatpush1.msra.mxu0 0.0
        %1132 = vmatprep.subr.mxu0 0.0
        %1133 = vmatpush1.msra.mxu0 0.0
        %1134 = vmatprep.subr.mxu0 0.0
        %1135 = vmatpush1.msra.mxu0 0.0
        %1136 = vmatprep.subr.mxu0 0.0
        %1137 = vmatpush1.msra.mxu0 0.0
        %1138 = vmatprep.subr.mxu0 0.0
        %1139 = vmatpush1.msra.mxu0 0.0
        %1140 = vmatprep.subr.mxu0 0.0
        %1141 = vmatpush1.msra.mxu0 0.0
        %1142 = vmatprep.subr.mxu0 0.0
        %1143 = vmatpush1.msra.mxu0 0.0
        %1144 = vmatprep.subr.mxu0 0.0
        %1145 = vmatpush1.msra.mxu0 0.0
        %1146 = vmatprep.subr.mxu0 0.0
        %1147 = vmatpush1.msra.mxu0 0.0
        %1148 = vmatprep.subr.mxu0 0.0
        %1149 = vmatpush1.msra.mxu0 0.0
        %1150 = vmatprep.subr.mxu0 0.0
        %1151 = vmatpush1.msra.mxu0 0.0
        %1152 = vmatprep.subr.mxu0 0.0
        %1153 = vmatpush1.msra.mxu0 0.0
        %1154 = vmatprep.subr.mxu0 0.0
        %1155 = vmatpush1.msra.mxu0 0.0
        %1156 = vmatprep.subr.mxu0 0.0
        %1157 = vmatpush1.msra.mxu0 0.0
        %1158 = vmatprep.subr.mxu0 0.0
        %1159 = vmatpush1.msra.mxu0 0.0
        %1160 = vmatprep.subr.mxu0 0.0
        %1161 = vmatpush1.msra.mxu0 0.0
        %1162 = vmatprep.subr.mxu0 0.0
        %1163 = vmatpush1.msra.mxu0 0.0
        %1164 = vmatprep.subr.mxu0 0.0
        %1165 = vmatpush1.msra.mxu0 0.0
        %1166 = vmatprep.subr.mxu0 0.0
        %1167 = vmatpush1.msra.mxu0 0.0
        %1168 = vmatprep.subr.mxu0 0.0
        %1169 = vmatpush1.msra.mxu0 0.0
        %1170 = vmatprep.subr.mxu0 0.0
        %1171 = vmatpush1.msra.mxu0 0.0
        %1172 = vmatprep.subr.mxu0 0.0
        %1173 = vmatpush1.msra.mxu0 0.0
        %1174 = vmatprep.subr.mxu0 0.0
        %1175 = vmatpush1.msra.mxu0 0.0
        %1176 = vmatprep.mubr.f32.mxu0 0.0
        %1177 = vmatmul.mubr.f32.gmra.mrb[0].mxu0 %v1077
        %v1178 = vpop.f32.mrb[0].mxu0
        %v1179 = vadd.f32 0.0, %v1178
        %v1180 = vpop.f32.mrb[0].mxu0
        %1181 = vmatprep.mubr.f32.mxu0 0.0
        %1182 = vmatmul.mubr.f32.gmra.mrb[0].mxu0 %v1080
        %v1183 = vpop.f32.mrb[0].mxu0
        %v1184 = vadd.f32 0.0, %v1183
        %v1185 = vpop.f32.mrb[0].mxu0
        %1186 = vmatprep.mubr.f32.mxu0 0.0
        %1187 = vmatmul.mubr.f32.gmra.mrb[0].mxu0 %v1083
        %v1188 = vpop.f32.mrb[0].mxu0
        %v1189 = vadd.f32 0.0, %v1188
        %v1190 = vpop.f32.mrb[0].mxu0
        %1191 = vmatprep.mubr.f32.mxu0 0.0
        %1192 = vmatmul.mubr.f32.gmra.mrb[0].mxu0 %v1086
        %v1193 = vpop.f32.mrb[0].mxu0
        %v1194 = vadd.f32 0.0, %v1193
        %v1195 = vpop.f32.mrb[0].mxu0
        %1196 = vmatprep.mubr.f32.mxu0 0.0
        %1197 = vmatmul.mubr.f32.gmra.mrb[0].mxu0 %v1089
        %v1198 = vpop.f32.mrb[0].mxu0
        %v1199 = vadd.f32 0.0, %v1198
        %v1200 = vpop.f32.mrb[0].mxu0
        %1201 = vmatprep.mubr.f32.mxu0 0.0
        %1202 = vmatmul.mubr.f32.gmra.mrb[0].mxu0 %v1092
        %v1203 = vpop.f32.mrb[0].mxu0
        %v1204 = vadd.f32 0.0, %v1203
        %v1205 = vpop.f32.mrb[0].mxu0
        %1206 = vmatprep.mubr.f32.mxu0 0.0
        %1207 = vmatmul.mubr.f32.gmra.mrb[0].mxu0 %v1095
        %v1208 = vpop.f32.mrb[0].mxu0
        %v1209 = vadd.f32 0.0, %v1208
        %v1210 = vpop.f32.mrb[0].mxu0
        %1211 = vmatprep.mubr.f32.mxu0 0.0
        %1212 = vmatmul.mubr.f32.gmra.mrb[0].mxu0 %v1098
        %v1213 = vpop.f32.mrb[0].mxu0
        %v1214 = vadd.f32 0.0, %v1213
        %v1215 = vpop.f32.mrb[0].mxu0
        %1216 = vmatprep.mubr.f32.mxu0 0.0
        %1217 = vmatmul.mubr.f32.gmra.mrb[0].mxu0 %v1101
        %v1218 = vpop.f32.mrb[0].mxu0
        %v1219 = vadd.f32 0.0, %v1218
        %v1220 = vpop.f32.mrb[0].mxu0
        %1221 = vmatprep.mubr.f32.mxu0 0.0
        %1222 = vmatmul.mubr.f32.gmra.mrb[0].mxu0 %v1104
        %v1223 = vpop.f32.mrb[0].mxu0
        %v1224 = vadd.f32 0.0, %v1223
        %v1225 = vpop.f32.mrb[0].mxu0
        %1226 = vmatprep.mubr.f32.mxu0 0.0
        %1227 = vmatmul.mubr.f32.gmra.mrb[0].mxu0 %v1107
        %v1228 = vpop.f32.mrb[0].mxu0
        %v1229 = vadd.f32 0.0, %v1228
        %v1230 = vpop.f32.mrb[0].mxu0
        %1231 = vmatprep.mubr.f32.mxu0 0.0
        %1232 = vmatmul.mubr.f32.gmra.mrb[0].mxu0 %v1110
        %v1233 = vpop.f32.mrb[0].mxu0
        %v1234 = vadd.f32 0.0, %v1233
        %v1235 = vpop.f32.mrb[0].mxu0
        %1236 = vdwg.mxu0
        %s1237 = scalar_lea.vmem %s4, 64
        %v1238 = vld [vmem:[%s1237] sm:$0xff]
        %v1239 = vld [vmem:[%s1237 + $0x8] sm:$0xff]
        %v1240 = vld [vmem:[%s1237 + $0x10] sm:$0xff]
        %v1241 = vld [vmem:[%s1237 + $0x18] sm:$0xff]
        %1243 = vset.pattern.permute.xlu0 0
        %1244 = vperm.xlu0 %1243, %v1238
        %v1245 = vpop.permute.xlu0 %1244
        %1248 = vset.pattern.permute.xlu0 0
        %1249 = vperm.xlu0 %1248, %v1239
        %v1250 = vpop.permute.xlu0 %1249
        %1253 = vset.pattern.permute.xlu0 0
        %1254 = vperm.xlu0 %1253, %v1240
        %v1255 = vpop.permute.xlu0 %1254
        %1258 = vset.pattern.permute.xlu0 0
        %1259 = vperm.xlu0 %1258, %v1241
        %v1260 = vpop.permute.xlu0 %1259
        %v1262 = vadd.f32 %v1179, %v1245
        %v1263 = vadd.f32 %v1184, %v1250
        %v1264 = vadd.f32 %v1189, %v1255
        %v1265 = vadd.f32 %v1194, %v1260
        %1270 = vrot.lane.b32.xlu0 %v1199, 127
        %v1271 = vpop.permute.xlu0 %1270
        %1272 = vrot.lane.b32.xlu0 %v1204, 127
        %v1273 = vpop.permute.xlu0 %1272
        %1274 = vrot.lane.b32.xlu0 %v1209, 127
        %v1275 = vpop.permute.xlu0 %1274
        %1276 = vrot.lane.b32.xlu0 %v1214, 127
        %v1277 = vpop.permute.xlu0 %1276
        %v1282 = vadd.f32 %v1262, %v1271
        %v1283 = vadd.f32 %v1263, %v1273
        %v1284 = vadd.f32 %v1264, %v1275
        %v1285 = vadd.f32 %v1265, %v1277
        %1290 = vrot.lane.b32.xlu0 %v1219, 126
        %v1291 = vpop.permute.xlu0 %1290
        %1292 = vrot.lane.b32.xlu0 %v1224, 126
        %v1293 = vpop.permute.xlu0 %1292
        %1294 = vrot.lane.b32.xlu0 %v1229, 126
        %v1295 = vpop.permute.xlu0 %1294
        %1296 = vrot.lane.b32.xlu0 %v1234, 126
        %v1297 = vpop.permute.xlu0 %1296
        %v1302 = vadd.f32 %v1282, %v1291
        %v1303 = vadd.f32 %v1283, %v1293
        %v1304 = vadd.f32 %v1284, %v1295
        %v1305 = vadd.f32 %v1285, %v1297
        %vm1306 = vcmask 130048
        %v1307 = vsel %vm1306, %v1302, 0.0
        %v1308 = vsel %vm1306, %v1303, 0.0
        %v1309 = vadd.f32 %v1307, %v1308
        %v1310 = vsel %vm1306, %v1304, 0.0
        %v1311 = vadd.f32 %v1309, %v1310
        %v1312 = vsel %vm1306, %v1305, 0.0
        %v1313 = vadd.f32 %v1311, %v1312
        %v1314 = vrot.slane %v1313, 4
        %v1315 = vadd.f32 %v1313, %v1314
        %v1316 = vrot.slane %v1315, 2
        %v1317 = vadd.f32 %v1315, %v1316
        %v1318 = vrot.slane %v1317, 1
        %v1319 = vadd.f32 %v1317, %v1318
        %v1320 = vmul.f32 %v1319, %v611
        %v1321 = vsub.f32 %v1302, %v1320
        %v1322 = vsub.f32 %v1303, %v1320
        %v1323 = vsub.f32 %v1304, %v1320
        %v1324 = vsub.f32 %v1305, %v1320
        %v1325 = vmul.f32 %v1321, %v1321
        %v1326 = vmul.f32 %v1322, %v1322
        %v1327 = vmul.f32 %v1323, %v1323
        %v1328 = vmul.f32 %v1324, %v1324
        %v1329 = vsel %vm1306, %v1325, 0.0
        %v1330 = vsel %vm1306, %v1326, 0.0
        %v1331 = vadd.f32 %v1329, %v1330
        %v1332 = vsel %vm1306, %v1327, 0.0
        %v1333 = vadd.f32 %v1331, %v1332
        %v1334 = vsel %vm1306, %v1328, 0.0
        %v1335 = vadd.f32 %v1333, %v1334
        %v1336 = vrot.slane %v1335, 4
        %v1337 = vadd.f32 %v1335, %v1336
        %v1338 = vrot.slane %v1337, 2
        %v1339 = vadd.f32 %v1337, %v1338
        %v1340 = vrot.slane %v1339, 1
        %v1341 = vadd.f32 %v1339, %v1340
        %v1342 = vmul.f32 %v1341, %v611
        %v1343 = vadd.f32 %v1342, 1e-05
        %v1344 = vrsqrt.pop %v1343
        %v1345 = vmul.f32 %v1321, %v1344
        %v1346 = vmul.f32 %v1322, %v1344
        %v1347 = vmul.f32 %v1323, %v1344
        %v1348 = vmul.f32 %v1324, %v1344
        %s1349 = scalar_lea.vmem %s5, 64
        %v1350 = vld [vmem:[%s1349] sm:$0xff]
        %v1351 = vld [vmem:[%s1349 + $0x8] sm:$0xff]
        %v1352 = vld [vmem:[%s1349 + $0x10] sm:$0xff]
        %v1353 = vld [vmem:[%s1349 + $0x18] sm:$0xff]
        %1355 = vset.pattern.permute.xlu0 0
        %1356 = vperm.xlu0 %1355, %v1350
        %v1357 = vpop.permute.xlu0 %1356
        %1360 = vset.pattern.permute.xlu0 0
        %1361 = vperm.xlu0 %1360, %v1351
        %v1362 = vpop.permute.xlu0 %1361
        %1365 = vset.pattern.permute.xlu0 0
        %1366 = vperm.xlu0 %1365, %v1352
        %v1367 = vpop.permute.xlu0 %1366
        %1370 = vset.pattern.permute.xlu0 0
        %1371 = vperm.xlu0 %1370, %v1353
        %v1372 = vpop.permute.xlu0 %1371
        %v1374 = vmul.f32 %v1345, %v1357
        %v1375 = vmul.f32 %v1346, %v1362
        %v1376 = vmul.f32 %v1347, %v1367
        %v1377 = vmul.f32 %v1348, %v1372
        %s1378 = scalar_lea.vmem %s6, 64
        %v1379 = vld [vmem:[%s1378] sm:$0xff]
        %v1380 = vld [vmem:[%s1378 + $0x8] sm:$0xff]
        %v1381 = vld [vmem:[%s1378 + $0x10] sm:$0xff]
        %v1382 = vld [vmem:[%s1378 + $0x18] sm:$0xff]
        %1384 = vset.pattern.permute.xlu0 0
        %1385 = vperm.xlu0 %1384, %v1379
        %v1386 = vpop.permute.xlu0 %1385
        %1389 = vset.pattern.permute.xlu0 0
        %1390 = vperm.xlu0 %1389, %v1380
        %v1391 = vpop.permute.xlu0 %1390
        %1394 = vset.pattern.permute.xlu0 0
        %1395 = vperm.xlu0 %1394, %v1381
        %v1396 = vpop.permute.xlu0 %1395
        %1399 = vset.pattern.permute.xlu0 0
        %1400 = vperm.xlu0 %1399, %v1382
        %v1401 = vpop.permute.xlu0 %1400
        %v1403 = vadd.f32 %v1374, %v1386
        %v1404 = vadd.f32 %v1375, %v1391
        %v1405 = vadd.f32 %v1376, %v1396
        %v1406 = vadd.f32 %v1377, %v1401
        %v1407 = vmax.f32 %v1403, 0.0
        %v1408 = vmax.f32 %v1404, 0.0
        %v1409 = vmax.f32 %v1405, 0.0
        %v1410 = vmax.f32 %v1406, 0.0
        %v1411 = vld [vmem:[%s7] sm:$0xf]
        %v1413 = vsel %vm720, %v1411, 0
        %1415 = vmatprep.subr.mxu0 0.0
        %1416 = vmatpush1.msra.mxu0 %v1407
        %1417 = vmatprep.subr.mxu0 0.0
        %1418 = vmatpush1.msra.mxu0 %v1408
        %1419 = vmatprep.subr.mxu0 0.0
        %1420 = vmatpush1.msra.mxu0 %v1409
        %1421 = vmatprep.subr.mxu0 0.0
        %1422 = vmatpush1.msra.mxu0 %v1410
        %1423 = vmatprep.subr.mxu0 0.0
        %1424 = vmatpush1.msra.mxu0 0.0
        %1425 = vmatprep.subr.mxu0 0.0
        %1426 = vmatpush1.msra.mxu0 0.0
        %1427 = vmatprep.subr.mxu0 0.0
        %1428 = vmatpush1.msra.mxu0 0.0
        %1429 = vmatprep.subr.mxu0 0.0
        %1430 = vmatpush1.msra.mxu0 0.0
        %1431 = vmatprep.subr.mxu0 0.0
        %1432 = vmatpush1.msra.mxu0 0.0
        %1433 = vmatprep.subr.mxu0 0.0
        %1434 = vmatpush1.msra.mxu0 0.0
        %1435 = vmatprep.subr.mxu0 0.0
        %1436 = vmatpush1.msra.mxu0 0.0
        %1437 = vmatprep.subr.mxu0 0.0
        %1438 = vmatpush1.msra.mxu0 0.0
        %1439 = vmatprep.subr.mxu0 0.0
        %1440 = vmatpush1.msra.mxu0 0.0
        %1441 = vmatprep.subr.mxu0 0.0
        %1442 = vmatpush1.msra.mxu0 0.0
        %1443 = vmatprep.subr.mxu0 0.0
        %1444 = vmatpush1.msra.mxu0 0.0
        %1445 = vmatprep.subr.mxu0 0.0
        %1446 = vmatpush1.msra.mxu0 0.0
        %1447 = vmatprep.subr.mxu0 0.0
        %1448 = vmatpush1.msra.mxu0 0.0
        %1449 = vmatprep.subr.mxu0 0.0
        %1450 = vmatpush1.msra.mxu0 0.0
        %1451 = vmatprep.subr.mxu0 0.0
        %1452 = vmatpush1.msra.mxu0 0.0
        %1453 = vmatprep.subr.mxu0 0.0
        %1454 = vmatpush1.msra.mxu0 0.0
        %1455 = vmatprep.subr.mxu0 0.0
        %1456 = vmatpush1.msra.mxu0 0.0
        %1457 = vmatprep.subr.mxu0 0.0
        %1458 = vmatpush1.msra.mxu0 0.0
        %1459 = vmatprep.subr.mxu0 0.0
        %1460 = vmatpush1.msra.mxu0 0.0
        %1461 = vmatprep.subr.mxu0 0.0
        %1462 = vmatpush1.msra.mxu0 0.0
        %1463 = vmatprep.subr.mxu0 0.0
        %1464 = vmatpush1.msra.mxu0 0.0
        %1465 = vmatprep.subr.mxu0 0.0
        %1466 = vmatpush1.msra.mxu0 0.0
        %1467 = vmatprep.subr.mxu0 0.0
        %1468 = vmatpush1.msra.mxu0 0.0
        %1469 = vmatprep.subr.mxu0 0.0
        %1470 = vmatpush1.msra.mxu0 0.0
        %1471 = vmatprep.subr.mxu0 0.0
        %1472 = vmatpush1.msra.mxu0 0.0
        %1473 = vmatprep.subr.mxu0 0.0
        %1474 = vmatpush1.msra.mxu0 0.0
        %1475 = vmatprep.subr.mxu0 0.0
        %1476 = vmatpush1.msra.mxu0 0.0
        %1477 = vmatprep.subr.mxu0 0.0
        %1478 = vmatpush1.msra.mxu0 0.0
        %1479 = vmatprep.mubr.f32.mxu0 0.0
        %1480 = vmatmul.mubr.f32.gmra.mrb[0].mxu0 %v1413
        %v1481 = vpop.f32.mrb[0].mxu0
        %v1482 = vadd.f32 0.0, %v1481
        %v1483 = vpop.f32.mrb[0].mxu0
        %1484 = vdwg.mxu0
        %1486 = vrot.lane.b32.xlu0 %v1482, 3
        %v1487 = vpop.permute.xlu0 %1486
        %v1489 = vadd.f32 %v342, %v1487
        %v1490 = vld [vmem:[%s8] sm:$0xf]
        %1492 = vset.pattern.permute.xlu0 0
        %1493 = vperm.xlu0 %1492, %v1490
        %v1494 = vpop.permute.xlu0 %1493
        %v1496 = vadd.f32 %v1489, %v1494
        %v1497 = vmul.f32 %v1496, %v348
        %1499 = vrot.lane.b32.xlu0 %v1497, 125
        %v1500 = vpop.permute.xlu0 %1499
        %vm1502 = vcmask 125952
        %1503 = vst.msk [vmem:[%s334] sm:$0xf] %vm1502, %v1500
        %s1504 = sand.u32 %s230, 1
        %s1505 = scalar_lea.sflag [#allocation3], %s1504
        %s1506 = sand.u32 %s230, 1
        %s1507 = smul.addr %s1506, 4
        %s1508 = scalar_lea.vmem [#allocation2], %s1507
        // Predicated region
        $region57: #{tpu_custom_call.1} parent=55 // pred_check
          %p1509 = pneg %p240
        $region58: #{tpu_custom_call.1} parent=55 // pred_check_branch
          %1511 = sbr.rel (%p1509) target = $region60
        $region59: #{tpu_custom_call.1} parent=55 // pred_region
          %s1513 = ssub.s32 64, 64
          %1514 = vsyncadd %s1505, %s1513
          %s1515 = smul.addr %s23, 64
          %s1516 = scalar_lea.hbm %s9, %s1515
          %s1518 = sshll.u32 %s1508, 4
          %s1519 = int_to_ptr.vmem [resolvable:$true] %s1518
          %1521 = dma.vmem_to_hbm [thread:$0]  %s1519, 64, %s1516, %s1505
        $region60: #{tpu_custom_call.1} parent=55 // pred_fallthru
          _
      $region56: #{tpu_custom_call.1} parent=5 // pred_fallthru
        _
      %p1522 = scmp.le.s32.totalorder 2, %s18
      // Predicated region
      $region61: #{tpu_custom_call.1} parent=5 // pred_check
        %p1523 = pneg %p1522
      $region62: #{tpu_custom_call.1} parent=5 // pred_check_branch
        %1525 = sbr.rel (%p1523) target = $region64
      $region63: #{tpu_custom_call.1} parent=5 // pred_region
        %s1526 = ssub.s32 %s18, 2
        // Predicated region
        $region65: #{tpu_custom_call.1} parent=63 // pred_check
          %p1527 = pneg %p246
        $region66: #{tpu_custom_call.1} parent=63 // pred_check_branch
          %1529 = sbr.rel (%p1527) target = $region68
        $region67: #{tpu_custom_call.1} parent=63 // pred_region
          %s1530 = sand.u32 %s231, 1
          %s1531 = scalar_lea.sflag [#allocation3], %s1530
          %s1532 = sand.u32 %s231, 1
          %s1533 = smul.addr %s1532, 4
          %s1534 = scalar_lea.vmem [#allocation2], %s1533
          %1535 = dma.done %s1531, 64
        $region68: #{tpu_custom_call.1} parent=63 // pred_fallthru
          _
      $region64: #{tpu_custom_call.1} parent=5 // pred_fallthru
        _
    $region6: #{tpu_custom_call.1} parent=1 // loop_footer
      %s22 = sadd.s32 1, %s18
    $region7: #{tpu_custom_call.1} parent=1 // loop_footer_branch
      %17 = sbr.rel target = $region3
    $region8: #{tpu_custom_call.1} parent=1 // loop_exit
      _
    %1536 = vsyncpa [#allocation3], 1
    %s1537 = scalar_lea.sflag [#allocation3], 1
    %1538 = vsyncpa %s1537, 1

</llo_original>
